<compile_context>
chip_gen: v6e
topology: v6e:2x2x1
jax: 0.10.0
libtpu: 0.0.40
codegen_flags: <defaults>
</compile_context>

<pallas_src>
import functools
import math

import jax
import jax.numpy as jnp
from jax.experimental import pallas as pl
from jax.experimental.pallas import tpu as pltpu

VMEM_SPEC = pl.BlockSpec(memory_space=pltpu.MemorySpace.VMEM)

SUBLANE = 8    # f32 sublane tile
LANE = 128     # lane width


# ----------------------------- fused Pallas kernel ---------------------------

def _gru_fc_kernel(x_ref, wih_ref, bxg_ref, whh_ref, bhn_ref, wfc_ref, bfc_ref,
                   o_ref, *, hidden, seq_len, batch):
    """Fused GRU (PyTorch gate order r,z,n; b_hn inside r*(...)) + last-step FC.

    x_ref : (T*B, Din)   bf16, time-major flattened input (row t*B + b == x[b, t, :])
    wih   : (Din, 3H)    bf16   bxg : (1, 3H) f32  (= b_ih with b_hr/b_hz folded in)
    whh   : (H, 3H)      bf16   bhn : (1, H)  f32  (= b_hn, stays inside r*(...))
    wfc   : (H, DoutP)   bf16   bfc : (1, DoutP) f32 (lane-padded)
    o_ref : (B, DoutP)   f32
    """
    H = hidden

    # Input pre-gates for ALL timesteps in ONE bf16 MXU matmul (f32 accumulate).
    xg = (jnp.dot(x_ref[...], wih_ref[...], preferred_element_type=jnp.float32)
          + bxg_ref[...])                                     # (T*B, 3H) f32

    whh = whh_ref[...]                                        # (H, 3H) bf16
    # Hoist the single remaining bias broadcast out of the unrolled loop.
    bhn = jnp.broadcast_to(bhn_ref[...], (batch, H))          # (B, H) f32

    # t = 0 : h == 0  ->  hidden matmul is identically zero, skip it entirely.
    g = xg[0:batch, :]                                        # aligned (8, 3H) view
    r = jax.nn.sigmoid(g[:, :H])
    z = jax.nn.sigmoid(g[:, H:2 * H])
    n = jnp.tanh(g[:, 2 * H:] + r * bhn)
    h = (1.0 - z) * n                                         # (B, H) f32

    # Static unroll: T is small & fixed -> full LLO scheduler visibility; each
    # step's MXU push overlaps the previous step's EUP sigmoid/tanh work.
    for t in range(1, seq_len):
        g = xg[t * batch:(t + 1) * batch, :]                  # aligned (8, 3H) view
        hg = jnp.dot(h.astype(jnp.bfloat16), whh,
                     preferred_element_type=jnp.float32)      # (B, 3H) f32
        r = jax.nn.sigmoid(g[:, :H] + hg[:, :H])
        z = jax.nn.sigmoid(g[:, H:2 * H] + hg[:, H:2 * H])
        n = jnp.tanh(g[:, 2 * H:] + r * (hg[:, 2 * H:] + bhn))
        h = (1.0 - z) * n + z * h

    # gru_out[:, -1, :] == h_T for a single-layer forward GRU; fuse the FC here.
    o_ref[...] = (jnp.dot(h.astype(jnp.bfloat16), wfc_ref[...],
                          preferred_element_type=jnp.float32)
                  + bfc_ref[...])                              # unmasked (8,128) vst


# ----------------------------- wrapper ---------------------------------------

def gru_fc_forward(params, x):
    """x: (B, T, Din) float32 -> (B, Dout) float32. PyTorch GRUFCModel semantics."""
    B, T, Din = x.shape
    H = params["w_hh"].shape[0]
    Dout = params["w_fc"].shape[1]

    B_pad = ((B + SUBLANE - 1) // SUBLANE) * SUBLANE
    Dout_pad = ((Dout + LANE - 1) // LANE) * LANE

    # Zero-pad batch to a full sublane tile, then time-major flatten so each step's
    # rows form one contiguous (8, Din) slab inside the kernel.
    if B_pad != B:
        x = jnp.pad(x, ((0, B_pad - B), (0, 0), (0, 0)))
    x_tm = (jnp.transpose(x, (1, 0, 2))
            .reshape(T * B_pad, Din)
            .astype(jnp.bfloat16))

    # Fold the r/z hidden biases into the input bias (exact: they sit outside the
    # r*(...) term); only b_hn remains as a separate per-step bias.
    b_xg = params["b_ih"].at[:2 * H].add(params["b_hh"][:2 * H])
    b_hn = params["b_hh"][2 * H:]

    # Lane-pad the FC so the output store is a full unmasked tile.
    w_fc_p = jnp.pad(params["w_fc"], ((0, 0), (0, Dout_pad - Dout)))
    b_fc_p = jnp.pad(params["b_fc"], (0, Dout_pad - Dout))

    kernel = functools.partial(_gru_fc_kernel, hidden=H, seq_len=T, batch=B_pad)
    out = pl.pallas_call(
        kernel,
        out_shape=jax.ShapeDtypeStruct((B_pad, Dout_pad), jnp.float32),
        in_specs=[VMEM_SPEC] * 7,
        out_specs=VMEM_SPEC,
    )(x_tm,
      params["w_ih"].astype(jnp.bfloat16), b_xg.reshape(1, -1),
      params["w_hh"].astype(jnp.bfloat16), b_hn.reshape(1, -1),
      w_fc_p.astype(jnp.bfloat16), b_fc_p.reshape(1, -1))

    return out[:B, :Dout]


# ----------------------------- pure-JAX reference ----------------------------

def gru_fc_reference(params, x):
    B, T, Din = x.shape
    H = params["w_hh"].shape[0]

    def step(h, x_t):
        xg = x_t @ params["w_ih"] + params["b_ih"]
        hg = h @ params["w_hh"] + params["b_hh"]
        r = jax.nn.sigmoid(xg[:, :H] + hg[:, :H])
        z = jax.nn.sigmoid(xg[:, H:2 * H] + hg[:, H:2 * H])
        n = jnp.tanh(xg[:, 2 * H:] + r * hg[:, 2 * H:])
        return (1.0 - z) * n + z * h, None

    h0 = jnp.zeros((B, H), jnp.float32)
    h_last, _ = jax.lax.scan(step, h0, jnp.transpose(x, (1, 0, 2)))
    return h_last @ params["w_fc"] + params["b_fc"]


# ----------------------------- parameter init --------------------------------

def init_params(key, input_dim, hidden_dim, output_dim):
    """PyTorch-style uniform(-1/sqrt(H), 1/sqrt(H)) init; weights pre-transposed."""
    ks = jax.random.split(key, 6)
    s = 1.0 / math.sqrt(hidden_dim)

    def u(k, shape):
        return jax.random.uniform(k, shape, jnp.float32, -s, s)

    return dict(
        w_ih=u(ks[0], (input_dim, 3 * hidden_dim)),
        b_ih=u(ks[1], (3 * hidden_dim,)),
        w_hh=u(ks[2], (hidden_dim, 3 * hidden_dim)),
        b_hh=u(ks[3], (3 * hidden_dim,)),
        w_fc=u(ks[4], (hidden_dim, output_dim)),
        b_fc=u(ks[5], (output_dim,)),
    )


# ----------------------------- main -------------------------------------------

if __name__ == "__main__":
    key = jax.random.PRNGKey(0)
    kp, kx = jax.random.split(key)

    B, T = 4, 16
    INPUT_DIM, HIDDEN_DIM, OUTPUT_DIM = 64, 128, 64

    params = init_params(kp, INPUT_DIM, HIDDEN_DIM, OUTPUT_DIM)
    x = jax.random.normal(kx, (B, T, INPUT_DIM), jnp.float32)

    fwd = jax.jit(gru_fc_forward)
    out = fwd(params, x)
    jax.block_until_ready(out)

    assert out.shape == (B, OUTPUT_DIM), out.shape

    ref = gru_fc_reference(params, x)
    max_err = float(jnp.max(jnp.abs(out - ref)))
    assert jnp.allclose(out, ref, rtol=2e-2, atol=2e-2), f"max_err={max_err}"

    print("KERNEL_OK")
</pallas_src>

<mosaic_0001>
module attributes {stable_mosaic.version = 11 : i64} {
  func.func @_gru_fc_kernel(%arg0: memref<128x64xbf16, #tpu.memory_space<vmem>>, %arg1: memref<64x384xbf16, #tpu.memory_space<vmem>>, %arg2: memref<1x384xf32, #tpu.memory_space<vmem>>, %arg3: memref<128x384xbf16, #tpu.memory_space<vmem>>, %arg4: memref<1x128xf32, #tpu.memory_space<vmem>>, %arg5: memref<128x128xbf16, #tpu.memory_space<vmem>>, %arg6: memref<1x128xf32, #tpu.memory_space<vmem>>, %arg7: memref<8x128xf32, #tpu.memory_space<vmem>>) attributes {dimension_semantics = [], scalar_prefetch = 0 : i64, scratch_operands = 0 : i64, tpu.core_type = #tpu.core_type<tc>} {
    %c0 = arith.constant 0 : index
    %c0_0 = arith.constant 0 : index
    %0 = vector.load %arg0[%c0, %c0_0] : memref<128x64xbf16, #tpu.memory_space<vmem>>, vector<128x64xbf16>
    %c0_1 = arith.constant 0 : index
    %c0_2 = arith.constant 0 : index
    %1 = vector.load %arg1[%c0_1, %c0_2] : memref<64x384xbf16, #tpu.memory_space<vmem>>, vector<64x384xbf16>
    %cst = arith.constant dense<0.000000e+00> : vector<128x384xf32>
    %2 = tpu.matmul %0, %1, %cst {dimension_numbers = #tpu.dot_dimension_numbers<[1], [0], [0], [1], [0, 0, 1, 1], [], []>} : vector<128x64xbf16>, vector<64x384xbf16>, vector<128x384xf32> -> vector<128x384xf32>
    %c0_3 = arith.constant 0 : index
    %c0_4 = arith.constant 0 : index
    %3 = vector.load %arg2[%c0_3, %c0_4] : memref<1x384xf32, #tpu.memory_space<vmem>>, vector<1x384xf32>
    %4 = vector.broadcast %3 : vector<1x384xf32> to vector<128x384xf32>
    %5 = arith.addf %2, %4 : vector<128x384xf32>
    %c0_5 = arith.constant 0 : index
    %c0_6 = arith.constant 0 : index
    %6 = vector.load %arg3[%c0_5, %c0_6] : memref<128x384xbf16, #tpu.memory_space<vmem>>, vector<128x384xbf16>
    %c0_7 = arith.constant 0 : index
    %c0_8 = arith.constant 0 : index
    %7 = vector.load %arg4[%c0_7, %c0_8] : memref<1x128xf32, #tpu.memory_space<vmem>>, vector<1x128xf32>
    %8 = vector.shape_cast %7 : vector<1x128xf32> to vector<1x128xf32>
    %9 = vector.broadcast %8 : vector<1x128xf32> to vector<8x128xf32>
    %10 = vector.extract_strided_slice %5 {offsets = [0, 0], sizes = [8, 384], strides = [1, 1]} : vector<128x384xf32> to vector<8x384xf32>
    %11 = vector.extract_strided_slice %10 {offsets = [0, 0], sizes = [8, 128], strides = [1, 1]} : vector<8x384xf32> to vector<8x128xf32>
    %12 = arith.negf %11 : vector<8x128xf32>
    %13 = math.exp %12 : vector<8x128xf32>
    %cst_9 = arith.constant 1.000000e+00 : f32
    %14 = vector.broadcast %cst_9 : f32 to vector<8x128xf32>
    %15 = arith.addf %14, %13 : vector<8x128xf32>
    %16 = arith.divf %14, %15 : vector<8x128xf32>
    %17 = vector.extract_strided_slice %10 {offsets = [0, 128], sizes = [8, 128], strides = [1, 1]} : vector<8x384xf32> to vector<8x128xf32>
    %18 = arith.negf %17 : vector<8x128xf32>
    %19 = math.exp %18 : vector<8x128xf32>
    %cst_10 = arith.constant 1.000000e+00 : f32
    %20 = vector.broadcast %cst_10 : f32 to vector<8x128xf32>
    %21 = arith.addf %20, %19 : vector<8x128xf32>
    %22 = arith.divf %20, %21 : vector<8x128xf32>
    %23 = vector.extract_strided_slice %10 {offsets = [0, 256], sizes = [8, 128], strides = [1, 1]} : vector<8x384xf32> to vector<8x128xf32>
    %24 = arith.mulf %16, %9 : vector<8x128xf32>
    %25 = arith.addf %23, %24 : vector<8x128xf32>
    %26 = math.tanh %25 : vector<8x128xf32>
    %cst_11 = arith.constant 1.000000e+00 : f32
    %27 = vector.broadcast %cst_11 : f32 to vector<8x128xf32>
    %28 = arith.subf %27, %22 : vector<8x128xf32>
    %29 = arith.mulf %28, %26 : vector<8x128xf32>
    %30 = vector.extract_strided_slice %5 {offsets = [8, 0], sizes = [8, 384], strides = [1, 1]} : vector<128x384xf32> to vector<8x384xf32>
    %31 = arith.truncf %29 : vector<8x128xf32> to vector<8x128xbf16>
    %cst_12 = arith.constant dense<0.000000e+00> : vector<8x384xf32>
    %32 = tpu.matmul %31, %6, %cst_12 {dimension_numbers = #tpu.dot_dimension_numbers<[1], [0], [0], [1], [0, 0, 1, 1], [], []>} : vector<8x128xbf16>, vector<128x384xbf16>, vector<8x384xf32> -> vector<8x384xf32>
    %33 = vector.extract_strided_slice %30 {offsets = [0, 0], sizes = [8, 128], strides = [1, 1]} : vector<8x384xf32> to vector<8x128xf32>
    %34 = vector.extract_strided_slice %32 {offsets = [0, 0], sizes = [8, 128], strides = [1, 1]} : vector<8x384xf32> to vector<8x128xf32>
    %35 = arith.addf %33, %34 : vector<8x128xf32>
    %36 = arith.negf %35 : vector<8x128xf32>
    %37 = math.exp %36 : vector<8x128xf32>
    %cst_13 = arith.constant 1.000000e+00 : f32
    %38 = vector.broadcast %cst_13 : f32 to vector<8x128xf32>
    %39 = arith.addf %38, %37 : vector<8x128xf32>
    %40 = arith.divf %38, %39 : vector<8x128xf32>
    %41 = vector.extract_strided_slice %30 {offsets = [0, 128], sizes = [8, 128], strides = [1, 1]} : vector<8x384xf32> to vector<8x128xf32>
    %42 = vector.extract_strided_slice %32 {offsets = [0, 128], sizes = [8, 128], strides = [1, 1]} : vector<8x384xf32> to vector<8x128xf32>
    %43 = arith.addf %41, %42 : vector<8x128xf32>
    %44 = arith.negf %43 : vector<8x128xf32>
    %45 = math.exp %44 : vector<8x128xf32>
    %cst_14 = arith.constant 1.000000e+00 : f32
    %46 = vector.broadcast %cst_14 : f32 to vector<8x128xf32>
    %47 = arith.addf %46, %45 : vector<8x128xf32>
    %48 = arith.divf %46, %47 : vector<8x128xf32>
    %49 = vector.extract_strided_slice %30 {offsets = [0, 256], sizes = [8, 128], strides = [1, 1]} : vector<8x384xf32> to vector<8x128xf32>
    %50 = vector.extract_strided_slice %32 {offsets = [0, 256], sizes = [8, 128], strides = [1, 1]} : vector<8x384xf32> to vector<8x128xf32>
    %51 = arith.addf %50, %9 : vector<8x128xf32>
    %52 = arith.mulf %40, %51 : vector<8x128xf32>
    %53 = arith.addf %49, %52 : vector<8x128xf32>
    %54 = math.tanh %53 : vector<8x128xf32>
    %cst_15 = arith.constant 1.000000e+00 : f32
    %55 = vector.broadcast %cst_15 : f32 to vector<8x128xf32>
    %56 = arith.subf %55, %48 : vector<8x128xf32>
    %57 = arith.mulf %56, %54 : vector<8x128xf32>
    %58 = arith.mulf %48, %29 : vector<8x128xf32>
    %59 = arith.addf %57, %58 : vector<8x128xf32>
    %60 = vector.extract_strided_slice %5 {offsets = [16, 0], sizes = [8, 384], strides = [1, 1]} : vector<128x384xf32> to vector<8x384xf32>
    %61 = arith.truncf %59 : vector<8x128xf32> to vector<8x128xbf16>
    %cst_16 = arith.constant dense<0.000000e+00> : vector<8x384xf32>
    %62 = tpu.matmul %61, %6, %cst_16 {dimension_numbers = #tpu.dot_dimension_numbers<[1], [0], [0], [1], [0, 0, 1, 1], [], []>} : vector<8x128xbf16>, vector<128x384xbf16>, vector<8x384xf32> -> vector<8x384xf32>
    %63 = vector.extract_strided_slice %60 {offsets = [0, 0], sizes = [8, 128], strides = [1, 1]} : vector<8x384xf32> to vector<8x128xf32>
    %64 = vector.extract_strided_slice %62 {offsets = [0, 0], sizes = [8, 128], strides = [1, 1]} : vector<8x384xf32> to vector<8x128xf32>
    %65 = arith.addf %63, %64 : vector<8x128xf32>
    %66 = arith.negf %65 : vector<8x128xf32>
    %67 = math.exp %66 : vector<8x128xf32>
    %cst_17 = arith.constant 1.000000e+00 : f32
    %68 = vector.broadcast %cst_17 : f32 to vector<8x128xf32>
    %69 = arith.addf %68, %67 : vector<8x128xf32>
    %70 = arith.divf %68, %69 : vector<8x128xf32>
    %71 = vector.extract_strided_slice %60 {offsets = [0, 128], sizes = [8, 128], strides = [1, 1]} : vector<8x384xf32> to vector<8x128xf32>
    %72 = vector.extract_strided_slice %62 {offsets = [0, 128], sizes = [8, 128], strides = [1, 1]} : vector<8x384xf32> to vector<8x128xf32>
    %73 = arith.addf %71, %72 : vector<8x128xf32>
    %74 = arith.negf %73 : vector<8x128xf32>
    %75 = math.exp %74 : vector<8x128xf32>
    %cst_18 = arith.constant 1.000000e+00 : f32
    %76 = vector.broadcast %cst_18 : f32 to vector<8x128xf32>
    %77 = arith.addf %76, %75 : vector<8x128xf32>
    %78 = arith.divf %76, %77 : vector<8x128xf32>
    %79 = vector.extract_strided_slice %60 {offsets = [0, 256], sizes = [8, 128], strides = [1, 1]} : vector<8x384xf32> to vector<8x128xf32>
    %80 = vector.extract_strided_slice %62 {offsets = [0, 256], sizes = [8, 128], strides = [1, 1]} : vector<8x384xf32> to vector<8x128xf32>
    %81 = arith.addf %80, %9 : vector<8x128xf32>
    %82 = arith.mulf %70, %81 : vector<8x128xf32>
    %83 = arith.addf %79, %82 : vector<8x128xf32>
    %84 = math.tanh %83 : vector<8x128xf32>
    %cst_19 = arith.constant 1.000000e+00 : f32
    %85 = vector.broadcast %cst_19 : f32 to vector<8x128xf32>
    %86 = arith.subf %85, %78 : vector<8x128xf32>
    %87 = arith.mulf %86, %84 : vector<8x128xf32>
    %88 = arith.mulf %78, %59 : vector<8x128xf32>
    %89 = arith.addf %87, %88 : vector<8x128xf32>
    %90 = vector.extract_strided_slice %5 {offsets = [24, 0], sizes = [8, 384], strides = [1, 1]} : vector<128x384xf32> to vector<8x384xf32>
    %91 = arith.truncf %89 : vector<8x128xf32> to vector<8x128xbf16>
    %cst_20 = arith.constant dense<0.000000e+00> : vector<8x384xf32>
    %92 = tpu.matmul %91, %6, %cst_20 {dimension_numbers = #tpu.dot_dimension_numbers<[1], [0], [0], [1], [0, 0, 1, 1], [], []>} : vector<8x128xbf16>, vector<128x384xbf16>, vector<8x384xf32> -> vector<8x384xf32>
    %93 = vector.extract_strided_slice %90 {offsets = [0, 0], sizes = [8, 128], strides = [1, 1]} : vector<8x384xf32> to vector<8x128xf32>
    %94 = vector.extract_strided_slice %92 {offsets = [0, 0], sizes = [8, 128], strides = [1, 1]} : vector<8x384xf32> to vector<8x128xf32>
    %95 = arith.addf %93, %94 : vector<8x128xf32>
    %96 = arith.negf %95 : vector<8x128xf32>
    %97 = math.exp %96 : vector<8x128xf32>
    %cst_21 = arith.constant 1.000000e+00 : f32
    %98 = vector.broadcast %cst_21 : f32 to vector<8x128xf32>
    %99 = arith.addf %98, %97 : vector<8x128xf32>
    %100 = arith.divf %98, %99 : vector<8x128xf32>
    %101 = vector.extract_strided_slice %90 {offsets = [0, 128], sizes = [8, 128], strides = [1, 1]} : vector<8x384xf32> to vector<8x128xf32>
    %102 = vector.extract_strided_slice %92 {offsets = [0, 128], sizes = [8, 128], strides = [1, 1]} : vector<8x384xf32> to vector<8x128xf32>
    %103 = arith.addf %101, %102 : vector<8x128xf32>
    %104 = arith.negf %103 : vector<8x128xf32>
    %105 = math.exp %104 : vector<8x128xf32>
    %cst_22 = arith.constant 1.000000e+00 : f32
    %106 = vector.broadcast %cst_22 : f32 to vector<8x128xf32>
    %107 = arith.addf %106, %105 : vector<8x128xf32>
    %108 = arith.divf %106, %107 : vector<8x128xf32>
    %109 = vector.extract_strided_slice %90 {offsets = [0, 256], sizes = [8, 128], strides = [1, 1]} : vector<8x384xf32> to vector<8x128xf32>
    %110 = vector.extract_strided_slice %92 {offsets = [0, 256], sizes = [8, 128], strides = [1, 1]} : vector<8x384xf32> to vector<8x128xf32>
    %111 = arith.addf %110, %9 : vector<8x128xf32>
    %112 = arith.mulf %100, %111 : vector<8x128xf32>
    %113 = arith.addf %109, %112 : vector<8x128xf32>
    %114 = math.tanh %113 : vector<8x128xf32>
    %cst_23 = arith.constant 1.000000e+00 : f32
    %115 = vector.broadcast %cst_23 : f32 to vector<8x128xf32>
    %116 = arith.subf %115, %108 : vector<8x128xf32>
    %117 = arith.mulf %116, %114 : vector<8x128xf32>
    %118 = arith.mulf %108, %89 : vector<8x128xf32>
    %119 = arith.addf %117, %118 : vector<8x128xf32>
    %120 = vector.extract_strided_slice %5 {offsets = [32, 0], sizes = [8, 384], strides = [1, 1]} : vector<128x384xf32> to vector<8x384xf32>
    %121 = arith.truncf %119 : vector<8x128xf32> to vector<8x128xbf16>
    %cst_24 = arith.constant dense<0.000000e+00> : vector<8x384xf32>
    %122 = tpu.matmul %121, %6, %cst_24 {dimension_numbers = #tpu.dot_dimension_numbers<[1], [0], [0], [1], [0, 0, 1, 1], [], []>} : vector<8x128xbf16>, vector<128x384xbf16>, vector<8x384xf32> -> vector<8x384xf32>
    %123 = vector.extract_strided_slice %120 {offsets = [0, 0], sizes = [8, 128], strides = [1, 1]} : vector<8x384xf32> to vector<8x128xf32>
    %124 = vector.extract_strided_slice %122 {offsets = [0, 0], sizes = [8, 128], strides = [1, 1]} : vector<8x384xf32> to vector<8x128xf32>
    %125 = arith.addf %123, %124 : vector<8x128xf32>
    %126 = arith.negf %125 : vector<8x128xf32>
    %127 = math.exp %126 : vector<8x128xf32>
    %cst_25 = arith.constant 1.000000e+00 : f32
    %128 = vector.broadcast %cst_25 : f32 to vector<8x128xf32>
    %129 = arith.addf %128, %127 : vector<8x128xf32>
    %130 = arith.divf %128, %129 : vector<8x128xf32>
    %131 = vector.extract_strided_slice %120 {offsets = [0, 128], sizes = [8, 128], strides = [1, 1]} : vector<8x384xf32> to vector<8x128xf32>
    %132 = vector.extract_strided_slice %122 {offsets = [0, 128], sizes = [8, 128], strides = [1, 1]} : vector<8x384xf32> to vector<8x128xf32>
    %133 = arith.addf %131, %132 : vector<8x128xf32>
    %134 = arith.negf %133 : vector<8x128xf32>
    %135 = math.exp %134 : vector<8x128xf32>
    %cst_26 = arith.constant 1.000000e+00 : f32
    %136 = vector.broadcast %cst_26 : f32 to vector<8x128xf32>
    %137 = arith.addf %136, %135 : vector<8x128xf32>
    %138 = arith.divf %136, %137 : vector<8x128xf32>
    %139 = vector.extract_strided_slice %120 {offsets = [0, 256], sizes = [8, 128], strides = [1, 1]} : vector<8x384xf32> to vector<8x128xf32>
    %140 = vector.extract_strided_slice %122 {offsets = [0, 256], sizes = [8, 128], strides = [1, 1]} : vector<8x384xf32> to vector<8x128xf32>
    %141 = arith.addf %140, %9 : vector<8x128xf32>
    %142 = arith.mulf %130, %141 : vector<8x128xf32>
    %143 = arith.addf %139, %142 : vector<8x128xf32>
    %144 = math.tanh %143 : vector<8x128xf32>
    %cst_27 = arith.constant 1.000000e+00 : f32
    %145 = vector.broadcast %cst_27 : f32 to vector<8x128xf32>
    %146 = arith.subf %145, %138 : vector<8x128xf32>
    %147 = arith.mulf %146, %144 : vector<8x128xf32>
    %148 = arith.mulf %138, %119 : vector<8x128xf32>
    %149 = arith.addf %147, %148 : vector<8x128xf32>
    %150 = vector.extract_strided_slice %5 {offsets = [40, 0], sizes = [8, 384], strides = [1, 1]} : vector<128x384xf32> to vector<8x384xf32>
    %151 = arith.truncf %149 : vector<8x128xf32> to vector<8x128xbf16>
    %cst_28 = arith.constant dense<0.000000e+00> : vector<8x384xf32>
    %152 = tpu.matmul %151, %6, %cst_28 {dimension_numbers = #tpu.dot_dimension_numbers<[1], [0], [0], [1], [0, 0, 1, 1], [], []>} : vector<8x128xbf16>, vector<128x384xbf16>, vector<8x384xf32> -> vector<8x384xf32>
    %153 = vector.extract_strided_slice %150 {offsets = [0, 0], sizes = [8, 128], strides = [1, 1]} : vector<8x384xf32> to vector<8x128xf32>
    %154 = vector.extract_strided_slice %152 {offsets = [0, 0], sizes = [8, 128], strides = [1, 1]} : vector<8x384xf32> to vector<8x128xf32>
    %155 = arith.addf %153, %154 : vector<8x128xf32>
    %156 = arith.negf %155 : vector<8x128xf32>
    %157 = math.exp %156 : vector<8x128xf32>
    %cst_29 = arith.constant 1.000000e+00 : f32
    %158 = vector.broadcast %cst_29 : f32 to vector<8x128xf32>
    %159 = arith.addf %158, %157 : vector<8x128xf32>
    %160 = arith.divf %158, %159 : vector<8x128xf32>
    %161 = vector.extract_strided_slice %150 {offsets = [0, 128], sizes = [8, 128], strides = [1, 1]} : vector<8x384xf32> to vector<8x128xf32>
    %162 = vector.extract_strided_slice %152 {offsets = [0, 128], sizes = [8, 128], strides = [1, 1]} : vector<8x384xf32> to vector<8x128xf32>
    %163 = arith.addf %161, %162 : vector<8x128xf32>
    %164 = arith.negf %163 : vector<8x128xf32>
    %165 = math.exp %164 : vector<8x128xf32>
    %cst_30 = arith.constant 1.000000e+00 : f32
    %166 = vector.broadcast %cst_30 : f32 to vector<8x128xf32>
    %167 = arith.addf %166, %165 : vector<8x128xf32>
    %168 = arith.divf %166, %167 : vector<8x128xf32>
    %169 = vector.extract_strided_slice %150 {offsets = [0, 256], sizes = [8, 128], strides = [1, 1]} : vector<8x384xf32> to vector<8x128xf32>
    %170 = vector.extract_strided_slice %152 {offsets = [0, 256], sizes = [8, 128], strides = [1, 1]} : vector<8x384xf32> to vector<8x128xf32>
    %171 = arith.addf %170, %9 : vector<8x128xf32>
    %172 = arith.mulf %160, %171 : vector<8x128xf32>
    %173 = arith.addf %169, %172 : vector<8x128xf32>
    %174 = math.tanh %173 : vector<8x128xf32>
    %cst_31 = arith.constant 1.000000e+00 : f32
    %175 = vector.broadcast %cst_31 : f32 to vector<8x128xf32>
    %176 = arith.subf %175, %168 : vector<8x128xf32>
    %177 = arith.mulf %176, %174 : vector<8x128xf32>
    %178 = arith.mulf %168, %149 : vector<8x128xf32>
    %179 = arith.addf %177, %178 : vector<8x128xf32>
    %180 = vector.extract_strided_slice %5 {offsets = [48, 0], sizes = [8, 384], strides = [1, 1]} : vector<128x384xf32> to vector<8x384xf32>
    %181 = arith.truncf %179 : vector<8x128xf32> to vector<8x128xbf16>
    %cst_32 = arith.constant dense<0.000000e+00> : vector<8x384xf32>
    %182 = tpu.matmul %181, %6, %cst_32 {dimension_numbers = #tpu.dot_dimension_numbers<[1], [0], [0], [1], [0, 0, 1, 1], [], []>} : vector<8x128xbf16>, vector<128x384xbf16>, vector<8x384xf32> -> vector<8x384xf32>
    %183 = vector.extract_strided_slice %180 {offsets = [0, 0], sizes = [8, 128], strides = [1, 1]} : vector<8x384xf32> to vector<8x128xf32>
    %184 = vector.extract_strided_slice %182 {offsets = [0, 0], sizes = [8, 128], strides = [1, 1]} : vector<8x384xf32> to vector<8x128xf32>
    %185 = arith.addf %183, %184 : vector<8x128xf32>
    %186 = arith.negf %185 : vector<8x128xf32>
    %187 = math.exp %186 : vector<8x128xf32>
    %cst_33 = arith.constant 1.000000e+00 : f32
    %188 = vector.broadcast %cst_33 : f32 to vector<8x128xf32>
    %189 = arith.addf %188, %187 : vector<8x128xf32>
    %190 = arith.divf %188, %189 : vector<8x128xf32>
    %191 = vector.extract_strided_slice %180 {offsets = [0, 128], sizes = [8, 128], strides = [1, 1]} : vector<8x384xf32> to vector<8x128xf32>
    %192 = vector.extract_strided_slice %182 {offsets = [0, 128], sizes = [8, 128], strides = [1, 1]} : vector<8x384xf32> to vector<8x128xf32>
    %193 = arith.addf %191, %192 : vector<8x128xf32>
    %194 = arith.negf %193 : vector<8x128xf32>
    %195 = math.exp %194 : vector<8x128xf32>
    %cst_34 = arith.constant 1.000000e+00 : f32
    %196 = vector.broadcast %cst_34 : f32 to vector<8x128xf32>
    %197 = arith.addf %196, %195 : vector<8x128xf32>
    %198 = arith.divf %196, %197 : vector<8x128xf32>
    %199 = vector.extract_strided_slice %180 {offsets = [0, 256], sizes = [8, 128], strides = [1, 1]} : vector<8x384xf32> to vector<8x128xf32>
    %200 = vector.extract_strided_slice %182 {offsets = [0, 256], sizes = [8, 128], strides = [1, 1]} : vector<8x384xf32> to vector<8x128xf32>
    %201 = arith.addf %200, %9 : vector<8x128xf32>
    %202 = arith.mulf %190, %201 : vector<8x128xf32>
    %203 = arith.addf %199, %202 : vector<8x128xf32>
    %204 = math.tanh %203 : vector<8x128xf32>
    %cst_35 = arith.constant 1.000000e+00 : f32
    %205 = vector.broadcast %cst_35 : f32 to vector<8x128xf32>
    %206 = arith.subf %205, %198 : vector<8x128xf32>
    %207 = arith.mulf %206, %204 : vector<8x128xf32>
    %208 = arith.mulf %198, %179 : vector<8x128xf32>
    %209 = arith.addf %207, %208 : vector<8x128xf32>
    %210 = vector.extract_strided_slice %5 {offsets = [56, 0], sizes = [8, 384], strides = [1, 1]} : vector<128x384xf32> to vector<8x384xf32>
    %211 = arith.truncf %209 : vector<8x128xf32> to vector<8x128xbf16>
    %cst_36 = arith.constant dense<0.000000e+00> : vector<8x384xf32>
    %212 = tpu.matmul %211, %6, %cst_36 {dimension_numbers = #tpu.dot_dimension_numbers<[1], [0], [0], [1], [0, 0, 1, 1], [], []>} : vector<8x128xbf16>, vector<128x384xbf16>, vector<8x384xf32> -> vector<8x384xf32>
    %213 = vector.extract_strided_slice %210 {offsets = [0, 0], sizes = [8, 128], strides = [1, 1]} : vector<8x384xf32> to vector<8x128xf32>
    %214 = vector.extract_strided_slice %212 {offsets = [0, 0], sizes = [8, 128], strides = [1, 1]} : vector<8x384xf32> to vector<8x128xf32>
    %215 = arith.addf %213, %214 : vector<8x128xf32>
    %216 = arith.negf %215 : vector<8x128xf32>
    %217 = math.exp %216 : vector<8x128xf32>
    %cst_37 = arith.constant 1.000000e+00 : f32
    %218 = vector.broadcast %cst_37 : f32 to vector<8x128xf32>
    %219 = arith.addf %218, %217 : vector<8x128xf32>
    %220 = arith.divf %218, %219 : vector<8x128xf32>
    %221 = vector.extract_strided_slice %210 {offsets = [0, 128], sizes = [8, 128], strides = [1, 1]} : vector<8x384xf32> to vector<8x128xf32>
    %222 = vector.extract_strided_slice %212 {offsets = [0, 128], sizes = [8, 128], strides = [1, 1]} : vector<8x384xf32> to vector<8x128xf32>
    %223 = arith.addf %221, %222 : vector<8x128xf32>
    %224 = arith.negf %223 : vector<8x128xf32>
    %225 = math.exp %224 : vector<8x128xf32>
    %cst_38 = arith.constant 1.000000e+00 : f32
    %226 = vector.broadcast %cst_38 : f32 to vector<8x128xf32>
    %227 = arith.addf %226, %225 : vector<8x128xf32>
    %228 = arith.divf %226, %227 : vector<8x128xf32>
    %229 = vector.extract_strided_slice %210 {offsets = [0, 256], sizes = [8, 128], strides = [1, 1]} : vector<8x384xf32> to vector<8x128xf32>
    %230 = vector.extract_strided_slice %212 {offsets = [0, 256], sizes = [8, 128], strides = [1, 1]} : vector<8x384xf32> to vector<8x128xf32>
    %231 = arith.addf %230, %9 : vector<8x128xf32>
    %232 = arith.mulf %220, %231 : vector<8x128xf32>
    %233 = arith.addf %229, %232 : vector<8x128xf32>
    %234 = math.tanh %233 : vector<8x128xf32>
    %cst_39 = arith.constant 1.000000e+00 : f32
    %235 = vector.broadcast %cst_39 : f32 to vector<8x128xf32>
    %236 = arith.subf %235, %228 : vector<8x128xf32>
    %237 = arith.mulf %236, %234 : vector<8x128xf32>
    %238 = arith.mulf %228, %209 : vector<8x128xf32>
    %239 = arith.addf %237, %238 : vector<8x128xf32>
    %240 = vector.extract_strided_slice %5 {offsets = [64, 0], sizes = [8, 384], strides = [1, 1]} : vector<128x384xf32> to vector<8x384xf32>
    %241 = arith.truncf %239 : vector<8x128xf32> to vector<8x128xbf16>
    %cst_40 = arith.constant dense<0.000000e+00> : vector<8x384xf32>
    %242 = tpu.matmul %241, %6, %cst_40 {dimension_numbers = #tpu.dot_dimension_numbers<[1], [0], [0], [1], [0, 0, 1, 1], [], []>} : vector<8x128xbf16>, vector<128x384xbf16>, vector<8x384xf32> -> vector<8x384xf32>
    %243 = vector.extract_strided_slice %240 {offsets = [0, 0], sizes = [8, 128], strides = [1, 1]} : vector<8x384xf32> to vector<8x128xf32>
    %244 = vector.extract_strided_slice %242 {offsets = [0, 0], sizes = [8, 128], strides = [1, 1]} : vector<8x384xf32> to vector<8x128xf32>
    %245 = arith.addf %243, %244 : vector<8x128xf32>
    %246 = arith.negf %245 : vector<8x128xf32>
    %247 = math.exp %246 : vector<8x128xf32>
    %cst_41 = arith.constant 1.000000e+00 : f32
    %248 = vector.broadcast %cst_41 : f32 to vector<8x128xf32>
    %249 = arith.addf %248, %247 : vector<8x128xf32>
    %250 = arith.divf %248, %249 : vector<8x128xf32>
    %251 = vector.extract_strided_slice %240 {offsets = [0, 128], sizes = [8, 128], strides = [1, 1]} : vector<8x384xf32> to vector<8x128xf32>
    %252 = vector.extract_strided_slice %242 {offsets = [0, 128], sizes = [8, 128], strides = [1, 1]} : vector<8x384xf32> to vector<8x128xf32>
    %253 = arith.addf %251, %252 : vector<8x128xf32>
    %254 = arith.negf %253 : vector<8x128xf32>
    %255 = math.exp %254 : vector<8x128xf32>
    %cst_42 = arith.constant 1.000000e+00 : f32
    %256 = vector.broadcast %cst_42 : f32 to vector<8x128xf32>
    %257 = arith.addf %256, %255 : vector<8x128xf32>
    %258 = arith.divf %256, %257 : vector<8x128xf32>
    %259 = vector.extract_strided_slice %240 {offsets = [0, 256], sizes = [8, 128], strides = [1, 1]} : vector<8x384xf32> to vector<8x128xf32>
    %260 = vector.extract_strided_slice %242 {offsets = [0, 256], sizes = [8, 128], strides = [1, 1]} : vector<8x384xf32> to vector<8x128xf32>
    %261 = arith.addf %260, %9 : vector<8x128xf32>
    %262 = arith.mulf %250, %261 : vector<8x128xf32>
    %263 = arith.addf %259, %262 : vector<8x128xf32>
    %264 = math.tanh %263 : vector<8x128xf32>
    %cst_43 = arith.constant 1.000000e+00 : f32
    %265 = vector.broadcast %cst_43 : f32 to vector<8x128xf32>
    %266 = arith.subf %265, %258 : vector<8x128xf32>
    %267 = arith.mulf %266, %264 : vector<8x128xf32>
    %268 = arith.mulf %258, %239 : vector<8x128xf32>
    %269 = arith.addf %267, %268 : vector<8x128xf32>
    %270 = vector.extract_strided_slice %5 {offsets = [72, 0], sizes = [8, 384], strides = [1, 1]} : vector<128x384xf32> to vector<8x384xf32>
    %271 = arith.truncf %269 : vector<8x128xf32> to vector<8x128xbf16>
    %cst_44 = arith.constant dense<0.000000e+00> : vector<8x384xf32>
    %272 = tpu.matmul %271, %6, %cst_44 {dimension_numbers = #tpu.dot_dimension_numbers<[1], [0], [0], [1], [0, 0, 1, 1], [], []>} : vector<8x128xbf16>, vector<128x384xbf16>, vector<8x384xf32> -> vector<8x384xf32>
    %273 = vector.extract_strided_slice %270 {offsets = [0, 0], sizes = [8, 128], strides = [1, 1]} : vector<8x384xf32> to vector<8x128xf32>
    %274 = vector.extract_strided_slice %272 {offsets = [0, 0], sizes = [8, 128], strides = [1, 1]} : vector<8x384xf32> to vector<8x128xf32>
    %275 = arith.addf %273, %274 : vector<8x128xf32>
    %276 = arith.negf %275 : vector<8x128xf32>
    %277 = math.exp %276 : vector<8x128xf32>
    %cst_45 = arith.constant 1.000000e+00 : f32
    %278 = vector.broadcast %cst_45 : f32 to vector<8x128xf32>
    %279 = arith.addf %278, %277 : vector<8x128xf32>
    %280 = arith.divf %278, %279 : vector<8x128xf32>
    %281 = vector.extract_strided_slice %270 {offsets = [0, 128], sizes = [8, 128], strides = [1, 1]} : vector<8x384xf32> to vector<8x128xf32>
    %282 = vector.extract_strided_slice %272 {offsets = [0, 128], sizes = [8, 128], strides = [1, 1]} : vector<8x384xf32> to vector<8x128xf32>
    %283 = arith.addf %281, %282 : vector<8x128xf32>
    %284 = arith.negf %283 : vector<8x128xf32>
    %285 = math.exp %284 : vector<8x128xf32>
    %cst_46 = arith.constant 1.000000e+00 : f32
    %286 = vector.broadcast %cst_46 : f32 to vector<8x128xf32>
    %287 = arith.addf %286, %285 : vector<8x128xf32>
    %288 = arith.divf %286, %287 : vector<8x128xf32>
    %289 = vector.extract_strided_slice %270 {offsets = [0, 256], sizes = [8, 128], strides = [1, 1]} : vector<8x384xf32> to vector<8x128xf32>
    %290 = vector.extract_strided_slice %272 {offsets = [0, 256], sizes = [8, 128], strides = [1, 1]} : vector<8x384xf32> to vector<8x128xf32>
    %291 = arith.addf %290, %9 : vector<8x128xf32>
    %292 = arith.mulf %280, %291 : vector<8x128xf32>
    %293 = arith.addf %289, %292 : vector<8x128xf32>
    %294 = math.tanh %293 : vector<8x128xf32>
    %cst_47 = arith.constant 1.000000e+00 : f32
    %295 = vector.broadcast %cst_47 : f32 to vector<8x128xf32>
    %296 = arith.subf %295, %288 : vector<8x128xf32>
    %297 = arith.mulf %296, %294 : vector<8x128xf32>
    %298 = arith.mulf %288, %269 : vector<8x128xf32>
    %299 = arith.addf %297, %298 : vector<8x128xf32>
    %300 = vector.extract_strided_slice %5 {offsets = [80, 0], sizes = [8, 384], strides = [1, 1]} : vector<128x384xf32> to vector<8x384xf32>
    %301 = arith.truncf %299 : vector<8x128xf32> to vector<8x128xbf16>
    %cst_48 = arith.constant dense<0.000000e+00> : vector<8x384xf32>
    %302 = tpu.matmul %301, %6, %cst_48 {dimension_numbers = #tpu.dot_dimension_numbers<[1], [0], [0], [1], [0, 0, 1, 1], [], []>} : vector<8x128xbf16>, vector<128x384xbf16>, vector<8x384xf32> -> vector<8x384xf32>
    %303 = vector.extract_strided_slice %300 {offsets = [0, 0], sizes = [8, 128], strides = [1, 1]} : vector<8x384xf32> to vector<8x128xf32>
    %304 = vector.extract_strided_slice %302 {offsets = [0, 0], sizes = [8, 128], strides = [1, 1]} : vector<8x384xf32> to vector<8x128xf32>
    %305 = arith.addf %303, %304 : vector<8x128xf32>
    %306 = arith.negf %305 : vector<8x128xf32>
    %307 = math.exp %306 : vector<8x128xf32>
    %cst_49 = arith.constant 1.000000e+00 : f32
    %308 = vector.broadcast %cst_49 : f32 to vector<8x128xf32>
    %309 = arith.addf %308, %307 : vector<8x128xf32>
    %310 = arith.divf %308, %309 : vector<8x128xf32>
    %311 = vector.extract_strided_slice %300 {offsets = [0, 128], sizes = [8, 128], strides = [1, 1]} : vector<8x384xf32> to vector<8x128xf32>
    %312 = vector.extract_strided_slice %302 {offsets = [0, 128], sizes = [8, 128], strides = [1, 1]} : vector<8x384xf32> to vector<8x128xf32>
    %313 = arith.addf %311, %312 : vector<8x128xf32>
    %314 = arith.negf %313 : vector<8x128xf32>
    %315 = math.exp %314 : vector<8x128xf32>
    %cst_50 = arith.constant 1.000000e+00 : f32
    %316 = vector.broadcast %cst_50 : f32 to vector<8x128xf32>
    %317 = arith.addf %316, %315 : vector<8x128xf32>
    %318 = arith.divf %316, %317 : vector<8x128xf32>
    %319 = vector.extract_strided_slice %300 {offsets = [0, 256], sizes = [8, 128], strides = [1, 1]} : vector<8x384xf32> to vector<8x128xf32>
    %320 = vector.extract_strided_slice %302 {offsets = [0, 256], sizes = [8, 128], strides = [1, 1]} : vector<8x384xf32> to vector<8x128xf32>
    %321 = arith.addf %320, %9 : vector<8x128xf32>
    %322 = arith.mulf %310, %321 : vector<8x128xf32>
    %323 = arith.addf %319, %322 : vector<8x128xf32>
    %324 = math.tanh %323 : vector<8x128xf32>
    %cst_51 = arith.constant 1.000000e+00 : f32
    %325 = vector.broadcast %cst_51 : f32 to vector<8x128xf32>
    %326 = arith.subf %325, %318 : vector<8x128xf32>
    %327 = arith.mulf %326, %324 : vector<8x128xf32>
    %328 = arith.mulf %318, %299 : vector<8x128xf32>
    %329 = arith.addf %327, %328 : vector<8x128xf32>
    %330 = vector.extract_strided_slice %5 {offsets = [88, 0], sizes = [8, 384], strides = [1, 1]} : vector<128x384xf32> to vector<8x384xf32>
    %331 = arith.truncf %329 : vector<8x128xf32> to vector<8x128xbf16>
    %cst_52 = arith.constant dense<0.000000e+00> : vector<8x384xf32>
    %332 = tpu.matmul %331, %6, %cst_52 {dimension_numbers = #tpu.dot_dimension_numbers<[1], [0], [0], [1], [0, 0, 1, 1], [], []>} : vector<8x128xbf16>, vector<128x384xbf16>, vector<8x384xf32> -> vector<8x384xf32>
    %333 = vector.extract_strided_slice %330 {offsets = [0, 0], sizes = [8, 128], strides = [1, 1]} : vector<8x384xf32> to vector<8x128xf32>
    %334 = vector.extract_strided_slice %332 {offsets = [0, 0], sizes = [8, 128], strides = [1, 1]} : vector<8x384xf32> to vector<8x128xf32>
    %335 = arith.addf %333, %334 : vector<8x128xf32>
    %336 = arith.negf %335 : vector<8x128xf32>
    %337 = math.exp %336 : vector<8x128xf32>
    %cst_53 = arith.constant 1.000000e+00 : f32
    %338 = vector.broadcast %cst_53 : f32 to vector<8x128xf32>
    %339 = arith.addf %338, %337 : vector<8x128xf32>
    %340 = arith.divf %338, %339 : vector<8x128xf32>
    %341 = vector.extract_strided_slice %330 {offsets = [0, 128], sizes = [8, 128], strides = [1, 1]} : vector<8x384xf32> to vector<8x128xf32>
    %342 = vector.extract_strided_slice %332 {offsets = [0, 128], sizes = [8, 128], strides = [1, 1]} : vector<8x384xf32> to vector<8x128xf32>
    %343 = arith.addf %341, %342 : vector<8x128xf32>
    %344 = arith.negf %343 : vector<8x128xf32>
    %345 = math.exp %344 : vector<8x128xf32>
    %cst_54 = arith.constant 1.000000e+00 : f32
    %346 = vector.broadcast %cst_54 : f32 to vector<8x128xf32>
    %347 = arith.addf %346, %345 : vector<8x128xf32>
    %348 = arith.divf %346, %347 : vector<8x128xf32>
    %349 = vector.extract_strided_slice %330 {offsets = [0, 256], sizes = [8, 128], strides = [1, 1]} : vector<8x384xf32> to vector<8x128xf32>
    %350 = vector.extract_strided_slice %332 {offsets = [0, 256], sizes = [8, 128], strides = [1, 1]} : vector<8x384xf32> to vector<8x128xf32>
    %351 = arith.addf %350, %9 : vector<8x128xf32>
    %352 = arith.mulf %340, %351 : vector<8x128xf32>
    %353 = arith.addf %349, %352 : vector<8x128xf32>
    %354 = math.tanh %353 : vector<8x128xf32>
    %cst_55 = arith.constant 1.000000e+00 : f32
    %355 = vector.broadcast %cst_55 : f32 to vector<8x128xf32>
    %356 = arith.subf %355, %348 : vector<8x128xf32>
    %357 = arith.mulf %356, %354 : vector<8x128xf32>
    %358 = arith.mulf %348, %329 : vector<8x128xf32>
    %359 = arith.addf %357, %358 : vector<8x128xf32>
    %360 = vector.extract_strided_slice %5 {offsets = [96, 0], sizes = [8, 384], strides = [1, 1]} : vector<128x384xf32> to vector<8x384xf32>
    %361 = arith.truncf %359 : vector<8x128xf32> to vector<8x128xbf16>
    %cst_56 = arith.constant dense<0.000000e+00> : vector<8x384xf32>
    %362 = tpu.matmul %361, %6, %cst_56 {dimension_numbers = #tpu.dot_dimension_numbers<[1], [0], [0], [1], [0, 0, 1, 1], [], []>} : vector<8x128xbf16>, vector<128x384xbf16>, vector<8x384xf32> -> vector<8x384xf32>
    %363 = vector.extract_strided_slice %360 {offsets = [0, 0], sizes = [8, 128], strides = [1, 1]} : vector<8x384xf32> to vector<8x128xf32>
    %364 = vector.extract_strided_slice %362 {offsets = [0, 0], sizes = [8, 128], strides = [1, 1]} : vector<8x384xf32> to vector<8x128xf32>
    %365 = arith.addf %363, %364 : vector<8x128xf32>
    %366 = arith.negf %365 : vector<8x128xf32>
    %367 = math.exp %366 : vector<8x128xf32>
    %cst_57 = arith.constant 1.000000e+00 : f32
    %368 = vector.broadcast %cst_57 : f32 to vector<8x128xf32>
    %369 = arith.addf %368, %367 : vector<8x128xf32>
    %370 = arith.divf %368, %369 : vector<8x128xf32>
    %371 = vector.extract_strided_slice %360 {offsets = [0, 128], sizes = [8, 128], strides = [1, 1]} : vector<8x384xf32> to vector<8x128xf32>
    %372 = vector.extract_strided_slice %362 {offsets = [0, 128], sizes = [8, 128], strides = [1, 1]} : vector<8x384xf32> to vector<8x128xf32>
    %373 = arith.addf %371, %372 : vector<8x128xf32>
    %374 = arith.negf %373 : vector<8x128xf32>
    %375 = math.exp %374 : vector<8x128xf32>
    %cst_58 = arith.constant 1.000000e+00 : f32
    %376 = vector.broadcast %cst_58 : f32 to vector<8x128xf32>
    %377 = arith.addf %376, %375 : vector<8x128xf32>
    %378 = arith.divf %376, %377 : vector<8x128xf32>
    %379 = vector.extract_strided_slice %360 {offsets = [0, 256], sizes = [8, 128], strides = [1, 1]} : vector<8x384xf32> to vector<8x128xf32>
    %380 = vector.extract_strided_slice %362 {offsets = [0, 256], sizes = [8, 128], strides = [1, 1]} : vector<8x384xf32> to vector<8x128xf32>
    %381 = arith.addf %380, %9 : vector<8x128xf32>
    %382 = arith.mulf %370, %381 : vector<8x128xf32>
    %383 = arith.addf %379, %382 : vector<8x128xf32>
    %384 = math.tanh %383 : vector<8x128xf32>
    %cst_59 = arith.constant 1.000000e+00 : f32
    %385 = vector.broadcast %cst_59 : f32 to vector<8x128xf32>
    %386 = arith.subf %385, %378 : vector<8x128xf32>
    %387 = arith.mulf %386, %384 : vector<8x128xf32>
    %388 = arith.mulf %378, %359 : vector<8x128xf32>
    %389 = arith.addf %387, %388 : vector<8x128xf32>
    %390 = vector.extract_strided_slice %5 {offsets = [104, 0], sizes = [8, 384], strides = [1, 1]} : vector<128x384xf32> to vector<8x384xf32>
    %391 = arith.truncf %389 : vector<8x128xf32> to vector<8x128xbf16>
    %cst_60 = arith.constant dense<0.000000e+00> : vector<8x384xf32>
    %392 = tpu.matmul %391, %6, %cst_60 {dimension_numbers = #tpu.dot_dimension_numbers<[1], [0], [0], [1], [0, 0, 1, 1], [], []>} : vector<8x128xbf16>, vector<128x384xbf16>, vector<8x384xf32> -> vector<8x384xf32>
    %393 = vector.extract_strided_slice %390 {offsets = [0, 0], sizes = [8, 128], strides = [1, 1]} : vector<8x384xf32> to vector<8x128xf32>
    %394 = vector.extract_strided_slice %392 {offsets = [0, 0], sizes = [8, 128], strides = [1, 1]} : vector<8x384xf32> to vector<8x128xf32>
    %395 = arith.addf %393, %394 : vector<8x128xf32>
    %396 = arith.negf %395 : vector<8x128xf32>
    %397 = math.exp %396 : vector<8x128xf32>
    %cst_61 = arith.constant 1.000000e+00 : f32
    %398 = vector.broadcast %cst_61 : f32 to vector<8x128xf32>
    %399 = arith.addf %398, %397 : vector<8x128xf32>
    %400 = arith.divf %398, %399 : vector<8x128xf32>
    %401 = vector.extract_strided_slice %390 {offsets = [0, 128], sizes = [8, 128], strides = [1, 1]} : vector<8x384xf32> to vector<8x128xf32>
    %402 = vector.extract_strided_slice %392 {offsets = [0, 128], sizes = [8, 128], strides = [1, 1]} : vector<8x384xf32> to vector<8x128xf32>
    %403 = arith.addf %401, %402 : vector<8x128xf32>
    %404 = arith.negf %403 : vector<8x128xf32>
    %405 = math.exp %404 : vector<8x128xf32>
    %cst_62 = arith.constant 1.000000e+00 : f32
    %406 = vector.broadcast %cst_62 : f32 to vector<8x128xf32>
    %407 = arith.addf %406, %405 : vector<8x128xf32>
    %408 = arith.divf %406, %407 : vector<8x128xf32>
    %409 = vector.extract_strided_slice %390 {offsets = [0, 256], sizes = [8, 128], strides = [1, 1]} : vector<8x384xf32> to vector<8x128xf32>
    %410 = vector.extract_strided_slice %392 {offsets = [0, 256], sizes = [8, 128], strides = [1, 1]} : vector<8x384xf32> to vector<8x128xf32>
    %411 = arith.addf %410, %9 : vector<8x128xf32>
    %412 = arith.mulf %400, %411 : vector<8x128xf32>
    %413 = arith.addf %409, %412 : vector<8x128xf32>
    %414 = math.tanh %413 : vector<8x128xf32>
    %cst_63 = arith.constant 1.000000e+00 : f32
    %415 = vector.broadcast %cst_63 : f32 to vector<8x128xf32>
    %416 = arith.subf %415, %408 : vector<8x128xf32>
    %417 = arith.mulf %416, %414 : vector<8x128xf32>
    %418 = arith.mulf %408, %389 : vector<8x128xf32>
    %419 = arith.addf %417, %418 : vector<8x128xf32>
    %420 = vector.extract_strided_slice %5 {offsets = [112, 0], sizes = [8, 384], strides = [1, 1]} : vector<128x384xf32> to vector<8x384xf32>
    %421 = arith.truncf %419 : vector<8x128xf32> to vector<8x128xbf16>
    %cst_64 = arith.constant dense<0.000000e+00> : vector<8x384xf32>
    %422 = tpu.matmul %421, %6, %cst_64 {dimension_numbers = #tpu.dot_dimension_numbers<[1], [0], [0], [1], [0, 0, 1, 1], [], []>} : vector<8x128xbf16>, vector<128x384xbf16>, vector<8x384xf32> -> vector<8x384xf32>
    %423 = vector.extract_strided_slice %420 {offsets = [0, 0], sizes = [8, 128], strides = [1, 1]} : vector<8x384xf32> to vector<8x128xf32>
    %424 = vector.extract_strided_slice %422 {offsets = [0, 0], sizes = [8, 128], strides = [1, 1]} : vector<8x384xf32> to vector<8x128xf32>
    %425 = arith.addf %423, %424 : vector<8x128xf32>
    %426 = arith.negf %425 : vector<8x128xf32>
    %427 = math.exp %426 : vector<8x128xf32>
    %cst_65 = arith.constant 1.000000e+00 : f32
    %428 = vector.broadcast %cst_65 : f32 to vector<8x128xf32>
    %429 = arith.addf %428, %427 : vector<8x128xf32>
    %430 = arith.divf %428, %429 : vector<8x128xf32>
    %431 = vector.extract_strided_slice %420 {offsets = [0, 128], sizes = [8, 128], strides = [1, 1]} : vector<8x384xf32> to vector<8x128xf32>
    %432 = vector.extract_strided_slice %422 {offsets = [0, 128], sizes = [8, 128], strides = [1, 1]} : vector<8x384xf32> to vector<8x128xf32>
    %433 = arith.addf %431, %432 : vector<8x128xf32>
    %434 = arith.negf %433 : vector<8x128xf32>
    %435 = math.exp %434 : vector<8x128xf32>
    %cst_66 = arith.constant 1.000000e+00 : f32
    %436 = vector.broadcast %cst_66 : f32 to vector<8x128xf32>
    %437 = arith.addf %436, %435 : vector<8x128xf32>
    %438 = arith.divf %436, %437 : vector<8x128xf32>
    %439 = vector.extract_strided_slice %420 {offsets = [0, 256], sizes = [8, 128], strides = [1, 1]} : vector<8x384xf32> to vector<8x128xf32>
    %440 = vector.extract_strided_slice %422 {offsets = [0, 256], sizes = [8, 128], strides = [1, 1]} : vector<8x384xf32> to vector<8x128xf32>
    %441 = arith.addf %440, %9 : vector<8x128xf32>
    %442 = arith.mulf %430, %441 : vector<8x128xf32>
    %443 = arith.addf %439, %442 : vector<8x128xf32>
    %444 = math.tanh %443 : vector<8x128xf32>
    %cst_67 = arith.constant 1.000000e+00 : f32
    %445 = vector.broadcast %cst_67 : f32 to vector<8x128xf32>
    %446 = arith.subf %445, %438 : vector<8x128xf32>
    %447 = arith.mulf %446, %444 : vector<8x128xf32>
    %448 = arith.mulf %438, %419 : vector<8x128xf32>
    %449 = arith.addf %447, %448 : vector<8x128xf32>
    %450 = vector.extract_strided_slice %5 {offsets = [120, 0], sizes = [8, 384], strides = [1, 1]} : vector<128x384xf32> to vector<8x384xf32>
    %451 = arith.truncf %449 : vector<8x128xf32> to vector<8x128xbf16>
    %cst_68 = arith.constant dense<0.000000e+00> : vector<8x384xf32>
    %452 = tpu.matmul %451, %6, %cst_68 {dimension_numbers = #tpu.dot_dimension_numbers<[1], [0], [0], [1], [0, 0, 1, 1], [], []>} : vector<8x128xbf16>, vector<128x384xbf16>, vector<8x384xf32> -> vector<8x384xf32>
    %453 = vector.extract_strided_slice %450 {offsets = [0, 0], sizes = [8, 128], strides = [1, 1]} : vector<8x384xf32> to vector<8x128xf32>
    %454 = vector.extract_strided_slice %452 {offsets = [0, 0], sizes = [8, 128], strides = [1, 1]} : vector<8x384xf32> to vector<8x128xf32>
    %455 = arith.addf %453, %454 : vector<8x128xf32>
    %456 = arith.negf %455 : vector<8x128xf32>
    %457 = math.exp %456 : vector<8x128xf32>
    %cst_69 = arith.constant 1.000000e+00 : f32
    %458 = vector.broadcast %cst_69 : f32 to vector<8x128xf32>
    %459 = arith.addf %458, %457 : vector<8x128xf32>
    %460 = arith.divf %458, %459 : vector<8x128xf32>
    %461 = vector.extract_strided_slice %450 {offsets = [0, 128], sizes = [8, 128], strides = [1, 1]} : vector<8x384xf32> to vector<8x128xf32>
    %462 = vector.extract_strided_slice %452 {offsets = [0, 128], sizes = [8, 128], strides = [1, 1]} : vector<8x384xf32> to vector<8x128xf32>
    %463 = arith.addf %461, %462 : vector<8x128xf32>
    %464 = arith.negf %463 : vector<8x128xf32>
    %465 = math.exp %464 : vector<8x128xf32>
    %cst_70 = arith.constant 1.000000e+00 : f32
    %466 = vector.broadcast %cst_70 : f32 to vector<8x128xf32>
    %467 = arith.addf %466, %465 : vector<8x128xf32>
    %468 = arith.divf %466, %467 : vector<8x128xf32>
    %469 = vector.extract_strided_slice %450 {offsets = [0, 256], sizes = [8, 128], strides = [1, 1]} : vector<8x384xf32> to vector<8x128xf32>
    %470 = vector.extract_strided_slice %452 {offsets = [0, 256], sizes = [8, 128], strides = [1, 1]} : vector<8x384xf32> to vector<8x128xf32>
    %471 = arith.addf %470, %9 : vector<8x128xf32>
    %472 = arith.mulf %460, %471 : vector<8x128xf32>
    %473 = arith.addf %469, %472 : vector<8x128xf32>
    %474 = math.tanh %473 : vector<8x128xf32>
    %cst_71 = arith.constant 1.000000e+00 : f32
    %475 = vector.broadcast %cst_71 : f32 to vector<8x128xf32>
    %476 = arith.subf %475, %468 : vector<8x128xf32>
    %477 = arith.mulf %476, %474 : vector<8x128xf32>
    %478 = arith.mulf %468, %449 : vector<8x128xf32>
    %479 = arith.addf %477, %478 : vector<8x128xf32>
    %480 = arith.truncf %479 : vector<8x128xf32> to vector<8x128xbf16>
    %c0_72 = arith.constant 0 : index
    %c0_73 = arith.constant 0 : index
    %481 = vector.load %arg5[%c0_72, %c0_73] : memref<128x128xbf16, #tpu.memory_space<vmem>>, vector<128x128xbf16>
    %cst_74 = arith.constant dense<0.000000e+00> : vector<8x128xf32>
    %482 = tpu.matmul %480, %481, %cst_74 {dimension_numbers = #tpu.dot_dimension_numbers<[1], [0], [0], [1], [0, 0, 1, 1], [], []>} : vector<8x128xbf16>, vector<128x128xbf16>, vector<8x128xf32> -> vector<8x128xf32>
    %c0_75 = arith.constant 0 : index
    %c0_76 = arith.constant 0 : index
    %483 = vector.load %arg6[%c0_75, %c0_76] : memref<1x128xf32, #tpu.memory_space<vmem>>, vector<1x128xf32>
    %484 = vector.broadcast %483 : vector<1x128xf32> to vector<8x128xf32>
    %485 = arith.addf %482, %484 : vector<8x128xf32>
    %c0_77 = arith.constant 0 : index
    %c0_78 = arith.constant 0 : index
    %486 = vector.load %arg7[%c0_77, %c0_78] : memref<8x128xf32, #tpu.memory_space<vmem>>, vector<8x128xf32>
    tpu.vector_store %arg7[%c0_77, %c0_78], %485 {strides = array<i32>} : memref<8x128xf32, #tpu.memory_space<vmem>>, vector<8x128xf32>,
    return
  }
}

</mosaic_0001>

<llo_original>
// kernel: gru_fc_forward.1
$region0: #{gru_fc_forward.1}
  #allocation0 [shape = 'u32[]', space=smem, size = 0x4, offset = 0x4, fixed_abs, tag = 'smem constant byte address 0x4 - core index']
  #allocation1 [shape = 'u32[144,128]{1,0:T(1,128)}', space=vmem, size = 0x12000, scoped, tag = 'internal scratch']
  %s0 = inlined_call_operand.vmem [shape: bf16[128,64], index: 0, kind: input, shape index: {}]
  %s1 = inlined_call_operand.vmem [shape: bf16[64,384], index: 1, kind: input, shape index: {}]
  %s2 = inlined_call_operand.vmem [shape: f32[1,384], index: 2, kind: input, shape index: {}]
  %s3 = inlined_call_operand.vmem [shape: bf16[128,384], index: 3, kind: input, shape index: {}]
  %s4 = inlined_call_operand.vmem [shape: f32[1,128], index: 4, kind: input, shape index: {}]
  %s5 = inlined_call_operand.vmem [shape: bf16[128,128], index: 5, kind: input, shape index: {}]
  %s6 = inlined_call_operand.vmem [shape: f32[1,128], index: 6, kind: input, shape index: {}]
  %s7 = inlined_call_operand.vmem [shape: f32[8,128], index: 7, kind: output, shape index: {}]
  %s8 = sld [smem:[#allocation0]]
  $region38: #{gru_fc_forward.1} parent=0
    _
  %s10 = ssub.s32 1, %s8
  %s11 = scalar_select 0, %s10, %s8
  // Predicated region
  $region2: #{gru_fc_forward.1} parent=0 // pred_check
    _
  $region3: #{gru_fc_forward.1} parent=0 // pred_check_branch
    %13 = sbr.rel (0) target = $region5
  $region4: #{gru_fc_forward.1} parent=0 // pred_region
    _
  $region5: #{gru_fc_forward.1} parent=0 // pred_fallthru
    _
  // Predicated region
  $region6: #{gru_fc_forward.1} parent=0 // pred_check
    _
  $region7: #{gru_fc_forward.1} parent=0 // pred_check_branch
    %15 = sbr.rel (0) target = $region9
  $region8: #{gru_fc_forward.1} parent=0 // pred_region
    _
  $region9: #{gru_fc_forward.1} parent=0 // pred_fallthru
    _
  // Predicated region
  $region10: #{gru_fc_forward.1} parent=0 // pred_check
    _
  $region11: #{gru_fc_forward.1} parent=0 // pred_check_branch
    %17 = sbr.rel (0) target = $region13
  $region12: #{gru_fc_forward.1} parent=0 // pred_region
    _
  $region13: #{gru_fc_forward.1} parent=0 // pred_fallthru
    _
  // Predicated region
  $region14: #{gru_fc_forward.1} parent=0 // pred_check
    _
  $region15: #{gru_fc_forward.1} parent=0 // pred_check_branch
    %19 = sbr.rel (0) target = $region17
  $region16: #{gru_fc_forward.1} parent=0 // pred_region
    _
  $region17: #{gru_fc_forward.1} parent=0 // pred_fallthru
    _
  // Predicated region
  $region18: #{gru_fc_forward.1} parent=0 // pred_check
    _
  $region19: #{gru_fc_forward.1} parent=0 // pred_check_branch
    %21 = sbr.rel (0) target = $region21
  $region20: #{gru_fc_forward.1} parent=0 // pred_region
    _
  $region21: #{gru_fc_forward.1} parent=0 // pred_fallthru
    _
  // Predicated region
  $region22: #{gru_fc_forward.1} parent=0 // pred_check
    _
  $region23: #{gru_fc_forward.1} parent=0 // pred_check_branch
    %23 = sbr.rel (0) target = $region25
  $region24: #{gru_fc_forward.1} parent=0 // pred_region
    _
  $region25: #{gru_fc_forward.1} parent=0 // pred_fallthru
    _
  // Predicated region
  $region26: #{gru_fc_forward.1} parent=0 // pred_check
    _
  $region27: #{gru_fc_forward.1} parent=0 // pred_check_branch
    %25 = sbr.rel (0) target = $region29
  $region28: #{gru_fc_forward.1} parent=0 // pred_region
    _
  $region29: #{gru_fc_forward.1} parent=0 // pred_fallthru
    _
  %v27 = vld [vmem:[%s0] sm:$0xf]
  %v28 = vld [vmem:[%s0 + $0x4] sm:$0xf]
  %v29 = vld [vmem:[%s0 + $0x8] sm:$0xf]
  %v30 = vld [vmem:[%s0 + $0xc] sm:$0xf]
  %v31 = vld [vmem:[%s0 + $0x10] sm:$0xf]
  %v32 = vld [vmem:[%s0 + $0x14] sm:$0xf]
  %v33 = vld [vmem:[%s0 + $0x18] sm:$0xf]
  %v34 = vld [vmem:[%s0 + $0x1c] sm:$0xf]
  %v35 = vld [vmem:[%s0 + $0x20] sm:$0xf]
  %v36 = vld [vmem:[%s0 + $0x24] sm:$0xf]
  %v37 = vld [vmem:[%s0 + $0x28] sm:$0xf]
  %v38 = vld [vmem:[%s0 + $0x2c] sm:$0xf]
  %v39 = vld [vmem:[%s0 + $0x30] sm:$0xf]
  %v40 = vld [vmem:[%s0 + $0x34] sm:$0xf]
  %v41 = vld [vmem:[%s0 + $0x38] sm:$0xf]
  %v42 = vld [vmem:[%s0 + $0x3c] sm:$0xf]
  %v43 = vld [vmem:[%s1] sm:$0xff]
  %v44 = vld [vmem:[%s1 + $0x8] sm:$0xf]
  %v45 = vld [vmem:[%s1 + $0xc] sm:$0xff]
  %v46 = vld [vmem:[%s1 + $0x14] sm:$0xf]
  %v47 = vld [vmem:[%s1 + $0x18] sm:$0xff]
  %v48 = vld [vmem:[%s1 + $0x20] sm:$0xf]
  %v49 = vld [vmem:[%s1 + $0x24] sm:$0xff]
  %v50 = vld [vmem:[%s1 + $0x2c] sm:$0xf]
  %v51 = vld [vmem:[%s1 + $0x30] sm:$0xff]
  %v52 = vld [vmem:[%s1 + $0x38] sm:$0xf]
  %v53 = vld [vmem:[%s1 + $0x3c] sm:$0xff]
  %v54 = vld [vmem:[%s1 + $0x44] sm:$0xf]
  %v55 = vld [vmem:[%s1 + $0x48] sm:$0xff]
  %v56 = vld [vmem:[%s1 + $0x50] sm:$0xf]
  %v57 = vld [vmem:[%s1 + $0x54] sm:$0xff]
  %v58 = vld [vmem:[%s1 + $0x5c] sm:$0xf]
  %v59 = vld [vmem:[%s2] sm:$0x7]
  %v61 = vlaneseq
  %v62 = vshrl.u32 %v61, 7
  %v63 = vsub.s32 0, %v62
  %v64 = vrot.slane %v59, %v63
  %v65 = vlaneseq
  %v66 = vshrl.u32 %v65, 7
  %v67 = vsub.s32 1, %v66
  %v68 = vrot.slane %v59, %v67
  %v69 = vlaneseq
  %v70 = vshrl.u32 %v69, 7
  %v71 = vsub.s32 2, %v70
  %v72 = vrot.slane %v59, %v71
  %v92 = vunpack.c.l.b16 %v27
  %v93 = vunpack.c.l.b16 %v28
  %v94 = vunpack.c.l.b16 %v29
  %v95 = vunpack.c.l.b16 %v30
  %v96 = vunpack.c.l.b16 %v31
  %v97 = vunpack.c.l.b16 %v32
  %v98 = vunpack.c.l.b16 %v33
  %v99 = vunpack.c.l.b16 %v34
  %v100 = vunpack.c.l.b16 %v35
  %v101 = vunpack.c.l.b16 %v36
  %v102 = vunpack.c.l.b16 %v37
  %v103 = vunpack.c.l.b16 %v38
  %v104 = vunpack.c.l.b16 %v39
  %v105 = vunpack.c.l.b16 %v40
  %v106 = vunpack.c.l.b16 %v41
  %v107 = vunpack.c.l.b16 %v42
  %v108 = vpack.c.b16 %v93, %v92
  %v109 = vpack.c.b16 %v95, %v94
  %v110 = vpack.c.b16 %v97, %v96
  %v111 = vpack.c.b16 %v99, %v98
  %v112 = vpack.c.b16 %v101, %v100
  %v113 = vpack.c.b16 %v103, %v102
  %v114 = vpack.c.b16 %v105, %v104
  %v115 = vpack.c.b16 %v107, %v106
  %v132 = vunpack.c.l.b16 %v43
  %v133 = vunpack.c.h.b16 %v43
  %v134 = vunpack.c.l.b16 %v44
  %v135 = vunpack.c.l.b16 %v45
  %v136 = vunpack.c.h.b16 %v45
  %v137 = vunpack.c.l.b16 %v46
  %v138 = vunpack.c.l.b16 %v47
  %v139 = vunpack.c.h.b16 %v47
  %v140 = vunpack.c.l.b16 %v48
  %v141 = vunpack.c.l.b16 %v49
  %v142 = vunpack.c.h.b16 %v49
  %v143 = vunpack.c.l.b16 %v50
  %v144 = vunpack.c.l.b16 %v51
  %v145 = vunpack.c.h.b16 %v51
  %v146 = vunpack.c.l.b16 %v52
  %v147 = vunpack.c.l.b16 %v53
  %v148 = vunpack.c.h.b16 %v53
  %v149 = vunpack.c.l.b16 %v54
  %v150 = vunpack.c.l.b16 %v55
  %v151 = vunpack.c.h.b16 %v55
  %v152 = vunpack.c.l.b16 %v56
  %v153 = vunpack.c.l.b16 %v57
  %v154 = vunpack.c.h.b16 %v57
  %v155 = vunpack.c.l.b16 %v58
  %v156 = vpack.c.b16 %v135, %v132
  %v157 = vpack.c.b16 %v136, %v133
  %v158 = vpack.c.b16 %v137, %v134
  %v159 = vpack.c.b16 %v141, %v138
  %v160 = vpack.c.b16 %v142, %v139
  %v161 = vpack.c.b16 %v143, %v140
  %v162 = vpack.c.b16 %v147, %v144
  %v163 = vpack.c.b16 %v148, %v145
  %v164 = vpack.c.b16 %v149, %v146
  %v165 = vpack.c.b16 %v153, %v150
  %v166 = vpack.c.b16 %v154, %v151
  %v167 = vpack.c.b16 %v155, %v152
  %vm180 = vcmask 523264
  %v182 = vsel %vm180, %v108, 0
  %v185 = vsel %vm180, %v109, 0
  %v188 = vsel %vm180, %v110, 0
  %v191 = vsel %vm180, %v111, 0
  %v194 = vsel %vm180, %v112, 0
  %v197 = vsel %vm180, %v113, 0
  %v200 = vsel %vm180, %v114, 0
  %v203 = vsel %vm180, %v115, 0
  %205 = vmatprep.subr.bf16.mxu0 0
  %206 = vmatpush1.bf16.msra.mxu0 0
  %207 = vmatprep.subr.bf16.mxu0 0
  %208 = vmatpush1.bf16.msra.mxu0 0
  %209 = vmatprep.subr.bf16.mxu0 0
  %210 = vmatpush1.bf16.msra.mxu0 0
  %211 = vmatprep.subr.bf16.mxu0 0
  %212 = vmatpush1.bf16.msra.mxu0 0
  %213 = vmatprep.subr.bf16.mxu0 %v166
  %214 = vmatpush1.bf16.msra.mxu0 %v165
  %215 = vmatprep.subr.bf16.mxu0 %v163
  %216 = vmatpush1.bf16.msra.mxu0 %v162
  %217 = vmatprep.subr.bf16.mxu0 %v160
  %218 = vmatpush1.bf16.msra.mxu0 %v159
  %219 = vmatprep.subr.bf16.mxu0 %v157
  %220 = vmatpush1.bf16.msra.mxu0 %v156
  %221 = vmatprep.subr.bf16.mxu0 0
  %222 = vmatpush2.bf16.msra.mxu0 0
  %223 = vmatprep.subr.bf16.mxu0 0
  %224 = vmatpush2.bf16.msra.mxu0 0
  %225 = vmatprep.subr.bf16.mxu0 0
  %226 = vmatpush2.bf16.msra.mxu0 0
  %227 = vmatprep.subr.bf16.mxu0 0
  %228 = vmatpush2.bf16.msra.mxu0 0
  %229 = vmatprep.subr.bf16.mxu0 0
  %230 = vmatpush2.bf16.msra.mxu0 0
  %231 = vmatprep.subr.bf16.mxu0 0
  %232 = vmatpush2.bf16.msra.mxu0 0
  %233 = vmatprep.subr.bf16.mxu0 0
  %234 = vmatpush2.bf16.msra.mxu0 0
  %235 = vmatprep.subr.bf16.mxu0 0
  %236 = vmatpush2.bf16.msra.mxu0 0
  %237 = vmatprep.mubr.bf16.mxu0 0
  %238 = vmatmul.mubr.bf16.gmra.mxu0 %v182
  %v239 = vpop.f32.mrf.mxu0
  %v240 = vadd.f32 %v64, %v239
  %v241 = vpop.f32.mrf.mxu0
  %v242 = vadd.f32 %v68, %v241
  %v243 = vpop.f32.mrf.mxu0
  %v244 = vadd.f32 %v64, %v243
  %v245 = vpop.f32.mrf.mxu0
  %v246 = vadd.f32 %v68, %v245
  %247 = vmatprep.mubr.bf16.mxu0 0
  %248 = vmatmul.mubr.bf16.gmra.mxu0 %v185
  %v249 = vpop.f32.mrf.mxu0
  %v250 = vadd.f32 %v64, %v249
  %v251 = vpop.f32.mrf.mxu0
  %v252 = vadd.f32 %v68, %v251
  %v253 = vpop.f32.mrf.mxu0
  %v254 = vadd.f32 %v64, %v253
  %v255 = vpop.f32.mrf.mxu0
  %v256 = vadd.f32 %v68, %v255
  %257 = vmatprep.mubr.bf16.mxu0 0
  %258 = vmatmul.mubr.bf16.gmra.mxu0 %v188
  %v259 = vpop.f32.mrf.mxu0
  %v260 = vadd.f32 %v64, %v259
  %v261 = vpop.f32.mrf.mxu0
  %v262 = vadd.f32 %v68, %v261
  %v263 = vpop.f32.mrf.mxu0
  %v264 = vadd.f32 %v64, %v263
  %v265 = vpop.f32.mrf.mxu0
  %v266 = vadd.f32 %v68, %v265
  %267 = vmatprep.mubr.bf16.mxu0 0
  %268 = vmatmul.mubr.bf16.gmra.mxu0 %v191
  %v269 = vpop.f32.mrf.mxu0
  %v270 = vadd.f32 %v64, %v269
  %v271 = vpop.f32.mrf.mxu0
  %v272 = vadd.f32 %v68, %v271
  %v273 = vpop.f32.mrf.mxu0
  %v274 = vadd.f32 %v64, %v273
  %v275 = vpop.f32.mrf.mxu0
  %v276 = vadd.f32 %v68, %v275
  %277 = vmatprep.mubr.bf16.mxu0 0
  %278 = vmatmul.mubr.bf16.gmra.mxu0 %v194
  %v279 = vpop.f32.mrf.mxu0
  %v280 = vadd.f32 %v64, %v279
  %v281 = vpop.f32.mrf.mxu0
  %v282 = vadd.f32 %v68, %v281
  %v283 = vpop.f32.mrf.mxu0
  %v284 = vadd.f32 %v64, %v283
  %v285 = vpop.f32.mrf.mxu0
  %v286 = vadd.f32 %v68, %v285
  %287 = vmatprep.mubr.bf16.mxu0 0
  %288 = vmatmul.mubr.bf16.gmra.mxu0 %v197
  %v289 = vpop.f32.mrf.mxu0
  %v290 = vadd.f32 %v64, %v289
  %v291 = vpop.f32.mrf.mxu0
  %v292 = vadd.f32 %v68, %v291
  %v293 = vpop.f32.mrf.mxu0
  %v294 = vadd.f32 %v64, %v293
  %v295 = vpop.f32.mrf.mxu0
  %v296 = vadd.f32 %v68, %v295
  %297 = vmatprep.mubr.bf16.mxu0 0
  %298 = vmatmul.mubr.bf16.gmra.mxu0 %v200
  %v299 = vpop.f32.mrf.mxu0
  %v300 = vadd.f32 %v64, %v299
  %v301 = vpop.f32.mrf.mxu0
  %v302 = vadd.f32 %v68, %v301
  %v303 = vpop.f32.mrf.mxu0
  %v304 = vadd.f32 %v64, %v303
  %v305 = vpop.f32.mrf.mxu0
  %v306 = vadd.f32 %v68, %v305
  %307 = vmatprep.mubr.bf16.mxu0 0
  %308 = vmatmul.mubr.bf16.gmra.mxu0 %v203
  %v309 = vpop.f32.mrf.mxu0
  %v310 = vadd.f32 %v64, %v309
  %v311 = vpop.f32.mrf.mxu0
  %v312 = vadd.f32 %v68, %v311
  %v313 = vpop.f32.mrf.mxu0
  %v314 = vadd.f32 %v64, %v313
  %v315 = vpop.f32.mrf.mxu0
  %v316 = vadd.f32 %v68, %v315
  %317 = vdwg.mxu0
  %318 = vmatprep.subr.bf16.mxu0 0
  %319 = vmatpush1.bf16.msra.mxu0 0
  %320 = vmatprep.subr.bf16.mxu0 0
  %321 = vmatpush1.bf16.msra.mxu0 0
  %322 = vmatprep.subr.bf16.mxu0 0
  %323 = vmatpush1.bf16.msra.mxu0 0
  %324 = vmatprep.subr.bf16.mxu0 0
  %325 = vmatpush1.bf16.msra.mxu0 0
  %326 = vmatprep.subr.bf16.mxu0 0
  %327 = vmatpush1.bf16.msra.mxu0 %v167
  %328 = vmatprep.subr.bf16.mxu0 0
  %329 = vmatpush1.bf16.msra.mxu0 %v164
  %330 = vmatprep.subr.bf16.mxu0 0
  %331 = vmatpush1.bf16.msra.mxu0 %v161
  %332 = vmatprep.subr.bf16.mxu0 0
  %333 = vmatpush1.bf16.msra.mxu0 %v158
  %334 = vmatprep.subr.bf16.mxu0 0
  %335 = vmatpush2.bf16.msra.mxu0 0
  %336 = vmatprep.subr.bf16.mxu0 0
  %337 = vmatpush2.bf16.msra.mxu0 0
  %338 = vmatprep.subr.bf16.mxu0 0
  %339 = vmatpush2.bf16.msra.mxu0 0
  %340 = vmatprep.subr.bf16.mxu0 0
  %341 = vmatpush2.bf16.msra.mxu0 0
  %342 = vmatprep.subr.bf16.mxu0 0
  %343 = vmatpush2.bf16.msra.mxu0 0
  %344 = vmatprep.subr.bf16.mxu0 0
  %345 = vmatpush2.bf16.msra.mxu0 0
  %346 = vmatprep.subr.bf16.mxu0 0
  %347 = vmatpush2.bf16.msra.mxu0 0
  %348 = vmatprep.subr.bf16.mxu0 0
  %349 = vmatpush2.bf16.msra.mxu0 0
  %350 = vmatprep.mubr.bf16.mxu0 0
  %351 = vmatmul.mubr.bf16.gmra.mxu0 %v182
  %v352 = vpop.f32.mrf.mxu0
  %v353 = vadd.f32 %v72, %v352
  %v354 = vpop.f32.mrf.mxu0
  %v355 = vpop.f32.mrf.mxu0
  %v356 = vadd.f32 %v72, %v355
  %v357 = vpop.f32.mrf.mxu0
  %358 = vmatprep.mubr.bf16.mxu0 0
  %359 = vmatmul.mubr.bf16.gmra.mxu0 %v185
  %v360 = vpop.f32.mrf.mxu0
  %v361 = vadd.f32 %v72, %v360
  %v362 = vpop.f32.mrf.mxu0
  %v363 = vpop.f32.mrf.mxu0
  %v364 = vadd.f32 %v72, %v363
  %v365 = vpop.f32.mrf.mxu0
  %366 = vmatprep.mubr.bf16.mxu0 0
  %367 = vmatmul.mubr.bf16.gmra.mxu0 %v188
  %v368 = vpop.f32.mrf.mxu0
  %v369 = vadd.f32 %v72, %v368
  %v370 = vpop.f32.mrf.mxu0
  %v371 = vpop.f32.mrf.mxu0
  %v372 = vadd.f32 %v72, %v371
  %v373 = vpop.f32.mrf.mxu0
  %374 = vmatprep.mubr.bf16.mxu0 0
  %375 = vmatmul.mubr.bf16.gmra.mxu0 %v191
  %v376 = vpop.f32.mrf.mxu0
  %v377 = vadd.f32 %v72, %v376
  %v378 = vpop.f32.mrf.mxu0
  %v379 = vpop.f32.mrf.mxu0
  %v380 = vadd.f32 %v72, %v379
  %v381 = vpop.f32.mrf.mxu0
  %382 = vmatprep.mubr.bf16.mxu0 0
  %383 = vmatmul.mubr.bf16.gmra.mxu0 %v194
  %v384 = vpop.f32.mrf.mxu0
  %v385 = vadd.f32 %v72, %v384
  %v386 = vpop.f32.mrf.mxu0
  %v387 = vpop.f32.mrf.mxu0
  %v388 = vadd.f32 %v72, %v387
  %v389 = vpop.f32.mrf.mxu0
  %390 = vmatprep.mubr.bf16.mxu0 0
  %391 = vmatmul.mubr.bf16.gmra.mxu0 %v197
  %v392 = vpop.f32.mrf.mxu0
  %v393 = vadd.f32 %v72, %v392
  %v394 = vpop.f32.mrf.mxu0
  %v395 = vpop.f32.mrf.mxu0
  %v396 = vadd.f32 %v72, %v395
  %v397 = vpop.f32.mrf.mxu0
  %398 = vmatprep.mubr.bf16.mxu0 0
  %399 = vmatmul.mubr.bf16.gmra.mxu0 %v200
  %v400 = vpop.f32.mrf.mxu0
  %v401 = vadd.f32 %v72, %v400
  %v402 = vpop.f32.mrf.mxu0
  %v403 = vpop.f32.mrf.mxu0
  %v404 = vadd.f32 %v72, %v403
  %v405 = vpop.f32.mrf.mxu0
  %406 = vmatprep.mubr.bf16.mxu0 0
  %407 = vmatmul.mubr.bf16.gmra.mxu0 %v203
  %v408 = vpop.f32.mrf.mxu0
  %v409 = vadd.f32 %v72, %v408
  %v410 = vpop.f32.mrf.mxu0
  %v411 = vpop.f32.mrf.mxu0
  %v412 = vadd.f32 %v72, %v411
  %v413 = vpop.f32.mrf.mxu0
  %414 = vdwg.mxu0
  %v415 = vld [vmem:[%s3] sm:$0xff]
  %v416 = vld [vmem:[%s3 + $0x8] sm:$0xf]
  %v417 = vld [vmem:[%s3 + $0xc] sm:$0xff]
  %v418 = vld [vmem:[%s3 + $0x14] sm:$0xf]
  %v419 = vld [vmem:[%s3 + $0x18] sm:$0xff]
  %v420 = vld [vmem:[%s3 + $0x20] sm:$0xf]
  %v421 = vld [vmem:[%s3 + $0x24] sm:$0xff]
  %v422 = vld [vmem:[%s3 + $0x2c] sm:$0xf]
  %v423 = vld [vmem:[%s3 + $0x30] sm:$0xff]
  %v424 = vld [vmem:[%s3 + $0x38] sm:$0xf]
  %v425 = vld [vmem:[%s3 + $0x3c] sm:$0xff]
  %v426 = vld [vmem:[%s3 + $0x44] sm:$0xf]
  %v427 = vld [vmem:[%s3 + $0x48] sm:$0xff]
  %v428 = vld [vmem:[%s3 + $0x50] sm:$0xf]
  %v429 = vld [vmem:[%s3 + $0x54] sm:$0xff]
  %v430 = vld [vmem:[%s3 + $0x5c] sm:$0xf]
  %v431 = vld [vmem:[%s3 + $0x60] sm:$0xff]
  %v432 = vld [vmem:[%s3 + $0x68] sm:$0xf]
  %v433 = vld [vmem:[%s3 + $0x6c] sm:$0xff]
  %v434 = vld [vmem:[%s3 + $0x74] sm:$0xf]
  %v435 = vld [vmem:[%s3 + $0x78] sm:$0xff]
  %v436 = vld [vmem:[%s3 + $0x80] sm:$0xf]
  %v437 = vld [vmem:[%s3 + $0x84] sm:$0xff]
  %v438 = vld [vmem:[%s3 + $0x8c] sm:$0xf]
  %v439 = vld [vmem:[%s3 + $0x90] sm:$0xff]
  %v440 = vld [vmem:[%s3 + $0x98] sm:$0xf]
  %v441 = vld [vmem:[%s3 + $0x9c] sm:$0xff]
  %v442 = vld [vmem:[%s3 + $0xa4] sm:$0xf]
  %v443 = vld [vmem:[%s3 + $0xa8] sm:$0xff]
  %v444 = vld [vmem:[%s3 + $0xb0] sm:$0xf]
  %v445 = vld [vmem:[%s3 + $0xb4] sm:$0xff]
  %v446 = vld [vmem:[%s3 + $0xbc] sm:$0xf]
  %v447 = vld [vmem:[%s4] sm:$0x1]
  %v449 = vlaneseq
  %v450 = vshrl.u32 %v449, 7
  %v451 = vsub.s32 0, %v450
  %v452 = vrot.slane %v447, %v451
  %v454 = vxor.u32 %v240, 2147483648
  %v455 = vmul.f32 %v454, 1.442695
  %v456 = vpow.pop %v455
  %v457 = vadd.f32 %v456, 1.0
  %v458 = vrcp.pop %v457
  %v459 = vmul.f32 1.0, %v458
  %v460 = vxor.u32 %v242, 2147483648
  %v461 = vmul.f32 %v460, 1.442695
  %v462 = vpow.pop %v461
  %v463 = vadd.f32 %v462, 1.0
  %v464 = vrcp.pop %v463
  %v465 = vmul.f32 1.0, %v464
  %v466 = vmul.f32 %v459, %v452
  %v467 = vadd.f32 %v353, %v466
  %v468 = vtanh.pop %v467
  %v469 = vsub.f32 1.0, %v465
  %v470 = vmul.f32 %v469, %v468
  %v471 = vpack.c.bf16 %v470, %v470
  %v504 = vunpack.c.l.b16 %v415
  %v505 = vunpack.c.h.b16 %v415
  %v506 = vunpack.c.l.b16 %v416
  %v507 = vunpack.c.l.b16 %v417
  %v508 = vunpack.c.h.b16 %v417
  %v509 = vunpack.c.l.b16 %v418
  %v510 = vunpack.c.l.b16 %v419
  %v511 = vunpack.c.h.b16 %v419
  %v512 = vunpack.c.l.b16 %v420
  %v513 = vunpack.c.l.b16 %v421
  %v514 = vunpack.c.h.b16 %v421
  %v515 = vunpack.c.l.b16 %v422
  %v516 = vunpack.c.l.b16 %v423
  %v517 = vunpack.c.h.b16 %v423
  %v518 = vunpack.c.l.b16 %v424
  %v519 = vunpack.c.l.b16 %v425
  %v520 = vunpack.c.h.b16 %v425
  %v521 = vunpack.c.l.b16 %v426
  %v522 = vunpack.c.l.b16 %v427
  %v523 = vunpack.c.h.b16 %v427
  %v524 = vunpack.c.l.b16 %v428
  %v525 = vunpack.c.l.b16 %v429
  %v526 = vunpack.c.h.b16 %v429
  %v527 = vunpack.c.l.b16 %v430
  %v528 = vunpack.c.l.b16 %v431
  %v529 = vunpack.c.h.b16 %v431
  %v530 = vunpack.c.l.b16 %v432
  %v531 = vunpack.c.l.b16 %v433
  %v532 = vunpack.c.h.b16 %v433
  %v533 = vunpack.c.l.b16 %v434
  %v534 = vunpack.c.l.b16 %v435
  %v535 = vunpack.c.h.b16 %v435
  %v536 = vunpack.c.l.b16 %v436
  %v537 = vunpack.c.l.b16 %v437
  %v538 = vunpack.c.h.b16 %v437
  %v539 = vunpack.c.l.b16 %v438
  %v540 = vunpack.c.l.b16 %v439
  %v541 = vunpack.c.h.b16 %v439
  %v542 = vunpack.c.l.b16 %v440
  %v543 = vunpack.c.l.b16 %v441
  %v544 = vunpack.c.h.b16 %v441
  %v545 = vunpack.c.l.b16 %v442
  %v546 = vunpack.c.l.b16 %v443
  %v547 = vunpack.c.h.b16 %v443
  %v548 = vunpack.c.l.b16 %v444
  %v549 = vunpack.c.l.b16 %v445
  %v550 = vunpack.c.h.b16 %v445
  %v551 = vunpack.c.l.b16 %v446
  %v552 = vpack.c.b16 %v507, %v504
  %v553 = vpack.c.b16 %v508, %v505
  %v554 = vpack.c.b16 %v509, %v506
  %v555 = vpack.c.b16 %v513, %v510
  %v556 = vpack.c.b16 %v514, %v511
  %v557 = vpack.c.b16 %v515, %v512
  %v558 = vpack.c.b16 %v519, %v516
  %v559 = vpack.c.b16 %v520, %v517
  %v560 = vpack.c.b16 %v521, %v518
  %v561 = vpack.c.b16 %v525, %v522
  %v562 = vpack.c.b16 %v526, %v523
  %v563 = vpack.c.b16 %v527, %v524
  %v564 = vpack.c.b16 %v531, %v528
  %v565 = vpack.c.b16 %v532, %v529
  %v566 = vpack.c.b16 %v533, %v530
  %v567 = vpack.c.b16 %v537, %v534
  %v568 = vpack.c.b16 %v538, %v535
  %v569 = vpack.c.b16 %v539, %v536
  %v570 = vpack.c.b16 %v543, %v540
  %v571 = vpack.c.b16 %v544, %v541
  %v572 = vpack.c.b16 %v545, %v542
  %v573 = vpack.c.b16 %v549, %v546
  %v574 = vpack.c.b16 %v550, %v547
  %v575 = vpack.c.b16 %v551, %v548
  %600 = vmatprep.subr.bf16.mxu0 %v574
  %601 = vmatpush1.bf16.msra.mxu0 %v573
  %602 = vmatprep.subr.bf16.mxu0 %v571
  %603 = vmatpush1.bf16.msra.mxu0 %v570
  %604 = vmatprep.subr.bf16.mxu0 %v568
  %605 = vmatpush1.bf16.msra.mxu0 %v567
  %606 = vmatprep.subr.bf16.mxu0 %v565
  %607 = vmatpush1.bf16.msra.mxu0 %v564
  %608 = vmatprep.subr.bf16.mxu0 %v562
  %609 = vmatpush1.bf16.msra.mxu0 %v561
  %610 = vmatprep.subr.bf16.mxu0 %v559
  %611 = vmatpush1.bf16.msra.mxu0 %v558
  %612 = vmatprep.subr.bf16.mxu0 %v556
  %613 = vmatpush1.bf16.msra.mxu0 %v555
  %614 = vmatprep.subr.bf16.mxu0 %v553
  %615 = vmatpush1.bf16.msra.mxu0 %v552
  %616 = vmatprep.subr.bf16.mxu0 0
  %617 = vmatpush2.bf16.msra.mxu0 0
  %618 = vmatprep.subr.bf16.mxu0 0
  %619 = vmatpush2.bf16.msra.mxu0 0
  %620 = vmatprep.subr.bf16.mxu0 0
  %621 = vmatpush2.bf16.msra.mxu0 0
  %622 = vmatprep.subr.bf16.mxu0 0
  %623 = vmatpush2.bf16.msra.mxu0 0
  %624 = vmatprep.subr.bf16.mxu0 0
  %625 = vmatpush2.bf16.msra.mxu0 0
  %626 = vmatprep.subr.bf16.mxu0 0
  %627 = vmatpush2.bf16.msra.mxu0 0
  %628 = vmatprep.subr.bf16.mxu0 0
  %629 = vmatpush2.bf16.msra.mxu0 0
  %630 = vmatprep.subr.bf16.mxu0 0
  %631 = vmatpush2.bf16.msra.mxu0 0
  %632 = vmatprep.mubr.bf16.mxu0 0
  %633 = vmatmul.mubr.bf16.gmra.mxu0 %v471
  %v634 = vpop.f32.mrf.mxu0
  %v635 = vadd.f32 0.0, %v634
  %v636 = vpop.f32.mrf.mxu0
  %v637 = vadd.f32 0.0, %v636
  %v638 = vpop.f32.mrf.mxu0
  %v639 = vpop.f32.mrf.mxu0
  %640 = vdwg.mxu0
  %641 = vmatprep.subr.bf16.mxu0 0
  %642 = vmatpush1.bf16.msra.mxu0 %v575
  %643 = vmatprep.subr.bf16.mxu0 0
  %644 = vmatpush1.bf16.msra.mxu0 %v572
  %645 = vmatprep.subr.bf16.mxu0 0
  %646 = vmatpush1.bf16.msra.mxu0 %v569
  %647 = vmatprep.subr.bf16.mxu0 0
  %648 = vmatpush1.bf16.msra.mxu0 %v566
  %649 = vmatprep.subr.bf16.mxu0 0
  %650 = vmatpush1.bf16.msra.mxu0 %v563
  %651 = vmatprep.subr.bf16.mxu0 0
  %652 = vmatpush1.bf16.msra.mxu0 %v560
  %653 = vmatprep.subr.bf16.mxu0 0
  %654 = vmatpush1.bf16.msra.mxu0 %v557
  %655 = vmatprep.subr.bf16.mxu0 0
  %656 = vmatpush1.bf16.msra.mxu0 %v554
  %657 = vmatprep.subr.bf16.mxu0 0
  %658 = vmatpush2.bf16.msra.mxu0 0
  %659 = vmatprep.subr.bf16.mxu0 0
  %660 = vmatpush2.bf16.msra.mxu0 0
  %661 = vmatprep.subr.bf16.mxu0 0
  %662 = vmatpush2.bf16.msra.mxu0 0
  %663 = vmatprep.subr.bf16.mxu0 0
  %664 = vmatpush2.bf16.msra.mxu0 0
  %665 = vmatprep.subr.bf16.mxu0 0
  %666 = vmatpush2.bf16.msra.mxu0 0
  %667 = vmatprep.subr.bf16.mxu0 0
  %668 = vmatpush2.bf16.msra.mxu0 0
  %669 = vmatprep.subr.bf16.mxu0 0
  %670 = vmatpush2.bf16.msra.mxu0 0
  %671 = vmatprep.subr.bf16.mxu0 0
  %672 = vmatpush2.bf16.msra.mxu0 0
  %673 = vmatprep.mubr.bf16.mxu0 0
  %674 = vmatmul.mubr.bf16.gmra.mxu0 %v471
  %v675 = vpop.f32.mrf.mxu0
  %v676 = vadd.f32 0.0, %v675
  %v677 = vpop.f32.mrf.mxu0
  %v678 = vpop.f32.mrf.mxu0
  %v679 = vpop.f32.mrf.mxu0
  %680 = vdwg.mxu0
  %v681 = vadd.f32 %v244, %v635
  %v682 = vxor.u32 %v681, 2147483648
  %v683 = vmul.f32 %v682, 1.442695
  %v684 = vpow.pop %v683
  %v685 = vadd.f32 %v684, 1.0
  %v686 = vrcp.pop %v685
  %v687 = vmul.f32 1.0, %v686
  %v688 = vadd.f32 %v246, %v637
  %v689 = vxor.u32 %v688, 2147483648
  %v690 = vmul.f32 %v689, 1.442695
  %v691 = vpow.pop %v690
  %v692 = vadd.f32 %v691, 1.0
  %v693 = vrcp.pop %v692
  %v694 = vmul.f32 1.0, %v693
  %v695 = vadd.f32 %v676, %v452
  %v696 = vmul.f32 %v687, %v695
  %v697 = vadd.f32 %v356, %v696
  %v698 = vtanh.pop %v697
  %v699 = vsub.f32 1.0, %v694
  %v700 = vmul.f32 %v699, %v698
  %v701 = vmul.f32 %v694, %v470
  %v702 = vadd.f32 %v700, %v701
  %v703 = vpack.c.bf16 %v702, %v702
  %704 = vmatprep.subr.bf16.mxu0 %v574
  %705 = vmatpush1.bf16.msra.mxu0 %v573
  %706 = vmatprep.subr.bf16.mxu0 %v571
  %707 = vmatpush1.bf16.msra.mxu0 %v570
  %708 = vmatprep.subr.bf16.mxu0 %v568
  %709 = vmatpush1.bf16.msra.mxu0 %v567
  %710 = vmatprep.subr.bf16.mxu0 %v565
  %711 = vmatpush1.bf16.msra.mxu0 %v564
  %712 = vmatprep.subr.bf16.mxu0 %v562
  %713 = vmatpush1.bf16.msra.mxu0 %v561
  %714 = vmatprep.subr.bf16.mxu0 %v559
  %715 = vmatpush1.bf16.msra.mxu0 %v558
  %716 = vmatprep.subr.bf16.mxu0 %v556
  %717 = vmatpush1.bf16.msra.mxu0 %v555
  %718 = vmatprep.subr.bf16.mxu0 %v553
  %719 = vmatpush1.bf16.msra.mxu0 %v552
  %720 = vmatprep.subr.bf16.mxu0 0
  %721 = vmatpush2.bf16.msra.mxu0 0
  %722 = vmatprep.subr.bf16.mxu0 0
  %723 = vmatpush2.bf16.msra.mxu0 0
  %724 = vmatprep.subr.bf16.mxu0 0
  %725 = vmatpush2.bf16.msra.mxu0 0
  %726 = vmatprep.subr.bf16.mxu0 0
  %727 = vmatpush2.bf16.msra.mxu0 0
  %728 = vmatprep.subr.bf16.mxu0 0
  %729 = vmatpush2.bf16.msra.mxu0 0
  %730 = vmatprep.subr.bf16.mxu0 0
  %731 = vmatpush2.bf16.msra.mxu0 0
  %732 = vmatprep.subr.bf16.mxu0 0
  %733 = vmatpush2.bf16.msra.mxu0 0
  %734 = vmatprep.subr.bf16.mxu0 0
  %735 = vmatpush2.bf16.msra.mxu0 0
  %736 = vmatprep.mubr.bf16.mxu0 0
  %737 = vmatmul.mubr.bf16.gmra.mxu0 %v703
  %v738 = vpop.f32.mrf.mxu0
  %v739 = vadd.f32 0.0, %v738
  %v740 = vpop.f32.mrf.mxu0
  %v741 = vadd.f32 0.0, %v740
  %v742 = vpop.f32.mrf.mxu0
  %v743 = vpop.f32.mrf.mxu0
  %744 = vdwg.mxu0
  %745 = vmatprep.subr.bf16.mxu0 0
  %746 = vmatpush1.bf16.msra.mxu0 %v575
  %747 = vmatprep.subr.bf16.mxu0 0
  %748 = vmatpush1.bf16.msra.mxu0 %v572
  %749 = vmatprep.subr.bf16.mxu0 0
  %750 = vmatpush1.bf16.msra.mxu0 %v569
  %751 = vmatprep.subr.bf16.mxu0 0
  %752 = vmatpush1.bf16.msra.mxu0 %v566
  %753 = vmatprep.subr.bf16.mxu0 0
  %754 = vmatpush1.bf16.msra.mxu0 %v563
  %755 = vmatprep.subr.bf16.mxu0 0
  %756 = vmatpush1.bf16.msra.mxu0 %v560
  %757 = vmatprep.subr.bf16.mxu0 0
  %758 = vmatpush1.bf16.msra.mxu0 %v557
  %759 = vmatprep.subr.bf16.mxu0 0
  %760 = vmatpush1.bf16.msra.mxu0 %v554
  %761 = vmatprep.subr.bf16.mxu0 0
  %762 = vmatpush2.bf16.msra.mxu0 0
  %763 = vmatprep.subr.bf16.mxu0 0
  %764 = vmatpush2.bf16.msra.mxu0 0
  %765 = vmatprep.subr.bf16.mxu0 0
  %766 = vmatpush2.bf16.msra.mxu0 0
  %767 = vmatprep.subr.bf16.mxu0 0
  %768 = vmatpush2.bf16.msra.mxu0 0
  %769 = vmatprep.subr.bf16.mxu0 0
  %770 = vmatpush2.bf16.msra.mxu0 0
  %771 = vmatprep.subr.bf16.mxu0 0
  %772 = vmatpush2.bf16.msra.mxu0 0
  %773 = vmatprep.subr.bf16.mxu0 0
  %774 = vmatpush2.bf16.msra.mxu0 0
  %775 = vmatprep.subr.bf16.mxu0 0
  %776 = vmatpush2.bf16.msra.mxu0 0
  %777 = vmatprep.mubr.bf16.mxu0 0
  %778 = vmatmul.mubr.bf16.gmra.mxu0 %v703
  %v779 = vpop.f32.mrf.mxu0
  %v780 = vadd.f32 0.0, %v779
  %v781 = vpop.f32.mrf.mxu0
  %v782 = vpop.f32.mrf.mxu0
  %v783 = vpop.f32.mrf.mxu0
  %784 = vdwg.mxu0
  %v785 = vadd.f32 %v250, %v739
  %v786 = vxor.u32 %v785, 2147483648
  %v787 = vmul.f32 %v786, 1.442695
  %v788 = vpow.pop %v787
  %v789 = vadd.f32 %v788, 1.0
  %v790 = vrcp.pop %v789
  %v791 = vmul.f32 1.0, %v790
  %v792 = vadd.f32 %v252, %v741
  %v793 = vxor.u32 %v792, 2147483648
  %v794 = vmul.f32 %v793, 1.442695
  %v795 = vpow.pop %v794
  %v796 = vadd.f32 %v795, 1.0
  %v797 = vrcp.pop %v796
  %v798 = vmul.f32 1.0, %v797
  %v799 = vadd.f32 %v780, %v452
  %v800 = vmul.f32 %v791, %v799
  %v801 = vadd.f32 %v361, %v800
  %v802 = vtanh.pop %v801
  %v803 = vsub.f32 1.0, %v798
  %v804 = vmul.f32 %v803, %v802
  %v805 = vmul.f32 %v798, %v702
  %v806 = vadd.f32 %v804, %v805
  %v807 = vpack.c.bf16 %v806, %v806
  %808 = vmatprep.subr.bf16.mxu0 %v574
  %809 = vmatpush1.bf16.msra.mxu0 %v573
  %810 = vmatprep.subr.bf16.mxu0 %v571
  %811 = vmatpush1.bf16.msra.mxu0 %v570
  %812 = vmatprep.subr.bf16.mxu0 %v568
  %813 = vmatpush1.bf16.msra.mxu0 %v567
  %814 = vmatprep.subr.bf16.mxu0 %v565
  %815 = vmatpush1.bf16.msra.mxu0 %v564
  %816 = vmatprep.subr.bf16.mxu0 %v562
  %817 = vmatpush1.bf16.msra.mxu0 %v561
  %818 = vmatprep.subr.bf16.mxu0 %v559
  %819 = vmatpush1.bf16.msra.mxu0 %v558
  %820 = vmatprep.subr.bf16.mxu0 %v556
  %821 = vmatpush1.bf16.msra.mxu0 %v555
  %822 = vmatprep.subr.bf16.mxu0 %v553
  %823 = vmatpush1.bf16.msra.mxu0 %v552
  %824 = vmatprep.subr.bf16.mxu0 0
  %825 = vmatpush2.bf16.msra.mxu0 0
  %826 = vmatprep.subr.bf16.mxu0 0
  %827 = vmatpush2.bf16.msra.mxu0 0
  %828 = vmatprep.subr.bf16.mxu0 0
  %829 = vmatpush2.bf16.msra.mxu0 0
  %830 = vmatprep.subr.bf16.mxu0 0
  %831 = vmatpush2.bf16.msra.mxu0 0
  %832 = vmatprep.subr.bf16.mxu0 0
  %833 = vmatpush2.bf16.msra.mxu0 0
  %834 = vmatprep.subr.bf16.mxu0 0
  %835 = vmatpush2.bf16.msra.mxu0 0
  %836 = vmatprep.subr.bf16.mxu0 0
  %837 = vmatpush2.bf16.msra.mxu0 0
  %838 = vmatprep.subr.bf16.mxu0 0
  %839 = vmatpush2.bf16.msra.mxu0 0
  %840 = vmatprep.mubr.bf16.mxu0 0
  %841 = vmatmul.mubr.bf16.gmra.mxu0 %v807
  %v842 = vpop.f32.mrf.mxu0
  %v843 = vadd.f32 0.0, %v842
  %v844 = vpop.f32.mrf.mxu0
  %v845 = vadd.f32 0.0, %v844
  %v846 = vpop.f32.mrf.mxu0
  %v847 = vpop.f32.mrf.mxu0
  %848 = vdwg.mxu0
  %849 = vmatprep.subr.bf16.mxu0 0
  %850 = vmatpush1.bf16.msra.mxu0 %v575
  %851 = vmatprep.subr.bf16.mxu0 0
  %852 = vmatpush1.bf16.msra.mxu0 %v572
  %853 = vmatprep.subr.bf16.mxu0 0
  %854 = vmatpush1.bf16.msra.mxu0 %v569
  %855 = vmatprep.subr.bf16.mxu0 0
  %856 = vmatpush1.bf16.msra.mxu0 %v566
  %857 = vmatprep.subr.bf16.mxu0 0
  %858 = vmatpush1.bf16.msra.mxu0 %v563
  %859 = vmatprep.subr.bf16.mxu0 0
  %860 = vmatpush1.bf16.msra.mxu0 %v560
  %861 = vmatprep.subr.bf16.mxu0 0
  %862 = vmatpush1.bf16.msra.mxu0 %v557
  %863 = vmatprep.subr.bf16.mxu0 0
  %864 = vmatpush1.bf16.msra.mxu0 %v554
  %865 = vmatprep.subr.bf16.mxu0 0
  %866 = vmatpush2.bf16.msra.mxu0 0
  %867 = vmatprep.subr.bf16.mxu0 0
  %868 = vmatpush2.bf16.msra.mxu0 0
  %869 = vmatprep.subr.bf16.mxu0 0
  %870 = vmatpush2.bf16.msra.mxu0 0
  %871 = vmatprep.subr.bf16.mxu0 0
  %872 = vmatpush2.bf16.msra.mxu0 0
  %873 = vmatprep.subr.bf16.mxu0 0
  %874 = vmatpush2.bf16.msra.mxu0 0
  %875 = vmatprep.subr.bf16.mxu0 0
  %876 = vmatpush2.bf16.msra.mxu0 0
  %877 = vmatprep.subr.bf16.mxu0 0
  %878 = vmatpush2.bf16.msra.mxu0 0
  %879 = vmatprep.subr.bf16.mxu0 0
  %880 = vmatpush2.bf16.msra.mxu0 0
  %881 = vmatprep.mubr.bf16.mxu0 0
  %882 = vmatmul.mubr.bf16.gmra.mxu0 %v807
  %v883 = vpop.f32.mrf.mxu0
  %v884 = vadd.f32 0.0, %v883
  %v885 = vpop.f32.mrf.mxu0
  %v886 = vpop.f32.mrf.mxu0
  %v887 = vpop.f32.mrf.mxu0
  %888 = vdwg.mxu0
  %v889 = vadd.f32 %v254, %v843
  %v890 = vxor.u32 %v889, 2147483648
  %v891 = vmul.f32 %v890, 1.442695
  %v892 = vpow.pop %v891
  %v893 = vadd.f32 %v892, 1.0
  %v894 = vrcp.pop %v893
  %v895 = vmul.f32 1.0, %v894
  %v896 = vadd.f32 %v256, %v845
  %v897 = vxor.u32 %v896, 2147483648
  %v898 = vmul.f32 %v897, 1.442695
  %v899 = vpow.pop %v898
  %v900 = vadd.f32 %v899, 1.0
  %v901 = vrcp.pop %v900
  %v902 = vmul.f32 1.0, %v901
  %v903 = vadd.f32 %v884, %v452
  %v904 = vmul.f32 %v895, %v903
  %v905 = vadd.f32 %v364, %v904
  %v906 = vtanh.pop %v905
  %v907 = vsub.f32 1.0, %v902
  %v908 = vmul.f32 %v907, %v906
  %v909 = vmul.f32 %v902, %v806
  %v910 = vadd.f32 %v908, %v909
  %v911 = vpack.c.bf16 %v910, %v910
  %912 = vmatprep.subr.bf16.mxu0 %v574
  %913 = vmatpush1.bf16.msra.mxu0 %v573
  %914 = vmatprep.subr.bf16.mxu0 %v571
  %915 = vmatpush1.bf16.msra.mxu0 %v570
  %916 = vmatprep.subr.bf16.mxu0 %v568
  %917 = vmatpush1.bf16.msra.mxu0 %v567
  %918 = vmatprep.subr.bf16.mxu0 %v565
  %919 = vmatpush1.bf16.msra.mxu0 %v564
  %920 = vmatprep.subr.bf16.mxu0 %v562
  %921 = vmatpush1.bf16.msra.mxu0 %v561
  %922 = vmatprep.subr.bf16.mxu0 %v559
  %923 = vmatpush1.bf16.msra.mxu0 %v558
  %924 = vmatprep.subr.bf16.mxu0 %v556
  %925 = vmatpush1.bf16.msra.mxu0 %v555
  %926 = vmatprep.subr.bf16.mxu0 %v553
  %927 = vmatpush1.bf16.msra.mxu0 %v552
  %928 = vmatprep.subr.bf16.mxu0 0
  %929 = vmatpush2.bf16.msra.mxu0 0
  %930 = vmatprep.subr.bf16.mxu0 0
  %931 = vmatpush2.bf16.msra.mxu0 0
  %932 = vmatprep.subr.bf16.mxu0 0
  %933 = vmatpush2.bf16.msra.mxu0 0
  %934 = vmatprep.subr.bf16.mxu0 0
  %935 = vmatpush2.bf16.msra.mxu0 0
  %936 = vmatprep.subr.bf16.mxu0 0
  %937 = vmatpush2.bf16.msra.mxu0 0
  %938 = vmatprep.subr.bf16.mxu0 0
  %939 = vmatpush2.bf16.msra.mxu0 0
  %940 = vmatprep.subr.bf16.mxu0 0
  %941 = vmatpush2.bf16.msra.mxu0 0
  %942 = vmatprep.subr.bf16.mxu0 0
  %943 = vmatpush2.bf16.msra.mxu0 0
  %944 = vmatprep.mubr.bf16.mxu0 0
  %945 = vmatmul.mubr.bf16.gmra.mxu0 %v911
  %v946 = vpop.f32.mrf.mxu0
  %v947 = vadd.f32 0.0, %v946
  %v948 = vpop.f32.mrf.mxu0
  %v949 = vadd.f32 0.0, %v948
  %v950 = vpop.f32.mrf.mxu0
  %v951 = vpop.f32.mrf.mxu0
  %952 = vdwg.mxu0
  %953 = vmatprep.subr.bf16.mxu0 0
  %954 = vmatpush1.bf16.msra.mxu0 %v575
  %955 = vmatprep.subr.bf16.mxu0 0
  %956 = vmatpush1.bf16.msra.mxu0 %v572
  %957 = vmatprep.subr.bf16.mxu0 0
  %958 = vmatpush1.bf16.msra.mxu0 %v569
  %959 = vmatprep.subr.bf16.mxu0 0
  %960 = vmatpush1.bf16.msra.mxu0 %v566
  %961 = vmatprep.subr.bf16.mxu0 0
  %962 = vmatpush1.bf16.msra.mxu0 %v563
  %963 = vmatprep.subr.bf16.mxu0 0
  %964 = vmatpush1.bf16.msra.mxu0 %v560
  %965 = vmatprep.subr.bf16.mxu0 0
  %966 = vmatpush1.bf16.msra.mxu0 %v557
  %967 = vmatprep.subr.bf16.mxu0 0
  %968 = vmatpush1.bf16.msra.mxu0 %v554
  %969 = vmatprep.subr.bf16.mxu0 0
  %970 = vmatpush2.bf16.msra.mxu0 0
  %971 = vmatprep.subr.bf16.mxu0 0
  %972 = vmatpush2.bf16.msra.mxu0 0
  %973 = vmatprep.subr.bf16.mxu0 0
  %974 = vmatpush2.bf16.msra.mxu0 0
  %975 = vmatprep.subr.bf16.mxu0 0
  %976 = vmatpush2.bf16.msra.mxu0 0
  %977 = vmatprep.subr.bf16.mxu0 0
  %978 = vmatpush2.bf16.msra.mxu0 0
  %979 = vmatprep.subr.bf16.mxu0 0
  %980 = vmatpush2.bf16.msra.mxu0 0
  %981 = vmatprep.subr.bf16.mxu0 0
  %982 = vmatpush2.bf16.msra.mxu0 0
  %983 = vmatprep.subr.bf16.mxu0 0
  %984 = vmatpush2.bf16.msra.mxu0 0
  %985 = vmatprep.mubr.bf16.mxu0 0
  %986 = vmatmul.mubr.bf16.gmra.mxu0 %v911
  %v987 = vpop.f32.mrf.mxu0
  %v988 = vadd.f32 0.0, %v987
  %v989 = vpop.f32.mrf.mxu0
  %v990 = vpop.f32.mrf.mxu0
  %v991 = vpop.f32.mrf.mxu0
  %992 = vdwg.mxu0
  %v993 = vadd.f32 %v260, %v947
  %v994 = vxor.u32 %v993, 2147483648
  %v995 = vmul.f32 %v994, 1.442695
  %v996 = vpow.pop %v995
  %v997 = vadd.f32 %v996, 1.0
  %v998 = vrcp.pop %v997
  %v999 = vmul.f32 1.0, %v998
  %v1000 = vadd.f32 %v262, %v949
  %v1001 = vxor.u32 %v1000, 2147483648
  %v1002 = vmul.f32 %v1001, 1.442695
  %v1003 = vpow.pop %v1002
  %v1004 = vadd.f32 %v1003, 1.0
  %v1005 = vrcp.pop %v1004
  %v1006 = vmul.f32 1.0, %v1005
  %v1007 = vadd.f32 %v988, %v452
  %v1008 = vmul.f32 %v999, %v1007
  %v1009 = vadd.f32 %v369, %v1008
  %v1010 = vtanh.pop %v1009
  %v1011 = vsub.f32 1.0, %v1006
  %v1012 = vmul.f32 %v1011, %v1010
  %v1013 = vmul.f32 %v1006, %v910
  %v1014 = vadd.f32 %v1012, %v1013
  %v1015 = vpack.c.bf16 %v1014, %v1014
  %1016 = vmatprep.subr.bf16.mxu0 %v574
  %1017 = vmatpush1.bf16.msra.mxu0 %v573
  %1018 = vmatprep.subr.bf16.mxu0 %v571
  %1019 = vmatpush1.bf16.msra.mxu0 %v570
  %1020 = vmatprep.subr.bf16.mxu0 %v568
  %1021 = vmatpush1.bf16.msra.mxu0 %v567
  %1022 = vmatprep.subr.bf16.mxu0 %v565
  %1023 = vmatpush1.bf16.msra.mxu0 %v564
  %1024 = vmatprep.subr.bf16.mxu0 %v562
  %1025 = vmatpush1.bf16.msra.mxu0 %v561
  %1026 = vmatprep.subr.bf16.mxu0 %v559
  %1027 = vmatpush1.bf16.msra.mxu0 %v558
  %1028 = vmatprep.subr.bf16.mxu0 %v556
  %1029 = vmatpush1.bf16.msra.mxu0 %v555
  %1030 = vmatprep.subr.bf16.mxu0 %v553
  %1031 = vmatpush1.bf16.msra.mxu0 %v552
  %1032 = vmatprep.subr.bf16.mxu0 0
  %1033 = vmatpush2.bf16.msra.mxu0 0
  %1034 = vmatprep.subr.bf16.mxu0 0
  %1035 = vmatpush2.bf16.msra.mxu0 0
  %1036 = vmatprep.subr.bf16.mxu0 0
  %1037 = vmatpush2.bf16.msra.mxu0 0
  %1038 = vmatprep.subr.bf16.mxu0 0
  %1039 = vmatpush2.bf16.msra.mxu0 0
  %1040 = vmatprep.subr.bf16.mxu0 0
  %1041 = vmatpush2.bf16.msra.mxu0 0
  %1042 = vmatprep.subr.bf16.mxu0 0
  %1043 = vmatpush2.bf16.msra.mxu0 0
  %1044 = vmatprep.subr.bf16.mxu0 0
  %1045 = vmatpush2.bf16.msra.mxu0 0
  %1046 = vmatprep.subr.bf16.mxu0 0
  %1047 = vmatpush2.bf16.msra.mxu0 0
  %1048 = vmatprep.mubr.bf16.mxu0 0
  %1049 = vmatmul.mubr.bf16.gmra.mxu0 %v1015
  %v1050 = vpop.f32.mrf.mxu0
  %v1051 = vadd.f32 0.0, %v1050
  %v1052 = vpop.f32.mrf.mxu0
  %v1053 = vadd.f32 0.0, %v1052
  %v1054 = vpop.f32.mrf.mxu0
  %v1055 = vpop.f32.mrf.mxu0
  %1056 = vdwg.mxu0
  %1057 = vmatprep.subr.bf16.mxu0 0
  %1058 = vmatpush1.bf16.msra.mxu0 %v575
  %1059 = vmatprep.subr.bf16.mxu0 0
  %1060 = vmatpush1.bf16.msra.mxu0 %v572
  %1061 = vmatprep.subr.bf16.mxu0 0
  %1062 = vmatpush1.bf16.msra.mxu0 %v569
  %1063 = vmatprep.subr.bf16.mxu0 0
  %1064 = vmatpush1.bf16.msra.mxu0 %v566
  %1065 = vmatprep.subr.bf16.mxu0 0
  %1066 = vmatpush1.bf16.msra.mxu0 %v563
  %1067 = vmatprep.subr.bf16.mxu0 0
  %1068 = vmatpush1.bf16.msra.mxu0 %v560
  %1069 = vmatprep.subr.bf16.mxu0 0
  %1070 = vmatpush1.bf16.msra.mxu0 %v557
  %1071 = vmatprep.subr.bf16.mxu0 0
  %1072 = vmatpush1.bf16.msra.mxu0 %v554
  %1073 = vmatprep.subr.bf16.mxu0 0
  %1074 = vmatpush2.bf16.msra.mxu0 0
  %1075 = vmatprep.subr.bf16.mxu0 0
  %1076 = vmatpush2.bf16.msra.mxu0 0
  %1077 = vmatprep.subr.bf16.mxu0 0
  %1078 = vmatpush2.bf16.msra.mxu0 0
  %1079 = vmatprep.subr.bf16.mxu0 0
  %1080 = vmatpush2.bf16.msra.mxu0 0
  %1081 = vmatprep.subr.bf16.mxu0 0
  %1082 = vmatpush2.bf16.msra.mxu0 0
  %1083 = vmatprep.subr.bf16.mxu0 0
  %1084 = vmatpush2.bf16.msra.mxu0 0
  %1085 = vmatprep.subr.bf16.mxu0 0
  %1086 = vmatpush2.bf16.msra.mxu0 0
  %1087 = vmatprep.subr.bf16.mxu0 0
  %1088 = vmatpush2.bf16.msra.mxu0 0
  %1089 = vmatprep.mubr.bf16.mxu0 0
  %1090 = vmatmul.mubr.bf16.gmra.mxu0 %v1015
  %v1091 = vpop.f32.mrf.mxu0
  %v1092 = vadd.f32 0.0, %v1091
  %v1093 = vpop.f32.mrf.mxu0
  %v1094 = vpop.f32.mrf.mxu0
  %v1095 = vpop.f32.mrf.mxu0
  %1096 = vdwg.mxu0
  %v1097 = vadd.f32 %v264, %v1051
  %v1098 = vxor.u32 %v1097, 2147483648
  %v1099 = vmul.f32 %v1098, 1.442695
  %v1100 = vpow.pop %v1099
  %v1101 = vadd.f32 %v1100, 1.0
  %v1102 = vrcp.pop %v1101
  %v1103 = vmul.f32 1.0, %v1102
  %v1104 = vadd.f32 %v266, %v1053
  %v1105 = vxor.u32 %v1104, 2147483648
  %v1106 = vmul.f32 %v1105, 1.442695
  %v1107 = vpow.pop %v1106
  %v1108 = vadd.f32 %v1107, 1.0
  %v1109 = vrcp.pop %v1108
  %v1110 = vmul.f32 1.0, %v1109
  %v1111 = vadd.f32 %v1092, %v452
  %v1112 = vmul.f32 %v1103, %v1111
  %v1113 = vadd.f32 %v372, %v1112
  %v1114 = vtanh.pop %v1113
  %v1115 = vsub.f32 1.0, %v1110
  %v1116 = vmul.f32 %v1115, %v1114
  %v1117 = vmul.f32 %v1110, %v1014
  %v1118 = vadd.f32 %v1116, %v1117
  %v1119 = vpack.c.bf16 %v1118, %v1118
  %1120 = vmatprep.subr.bf16.mxu0 %v574
  %1121 = vmatpush1.bf16.msra.mxu0 %v573
  %1122 = vmatprep.subr.bf16.mxu0 %v571
  %1123 = vmatpush1.bf16.msra.mxu0 %v570
  %1124 = vmatprep.subr.bf16.mxu0 %v568
  %1125 = vmatpush1.bf16.msra.mxu0 %v567
  %1126 = vmatprep.subr.bf16.mxu0 %v565
  %1127 = vmatpush1.bf16.msra.mxu0 %v564
  %1128 = vmatprep.subr.bf16.mxu0 %v562
  %1129 = vmatpush1.bf16.msra.mxu0 %v561
  %1130 = vmatprep.subr.bf16.mxu0 %v559
  %1131 = vmatpush1.bf16.msra.mxu0 %v558
  %1132 = vmatprep.subr.bf16.mxu0 %v556
  %1133 = vmatpush1.bf16.msra.mxu0 %v555
  %1134 = vmatprep.subr.bf16.mxu0 %v553
  %1135 = vmatpush1.bf16.msra.mxu0 %v552
  %1136 = vmatprep.subr.bf16.mxu0 0
  %1137 = vmatpush2.bf16.msra.mxu0 0
  %1138 = vmatprep.subr.bf16.mxu0 0
  %1139 = vmatpush2.bf16.msra.mxu0 0
  %1140 = vmatprep.subr.bf16.mxu0 0
  %1141 = vmatpush2.bf16.msra.mxu0 0
  %1142 = vmatprep.subr.bf16.mxu0 0
  %1143 = vmatpush2.bf16.msra.mxu0 0
  %1144 = vmatprep.subr.bf16.mxu0 0
  %1145 = vmatpush2.bf16.msra.mxu0 0
  %1146 = vmatprep.subr.bf16.mxu0 0
  %1147 = vmatpush2.bf16.msra.mxu0 0
  %1148 = vmatprep.subr.bf16.mxu0 0
  %1149 = vmatpush2.bf16.msra.mxu0 0
  %1150 = vmatprep.subr.bf16.mxu0 0
  %1151 = vmatpush2.bf16.msra.mxu0 0
  %1152 = vmatprep.mubr.bf16.mxu0 0
  %1153 = vmatmul.mubr.bf16.gmra.mxu0 %v1119
  %v1154 = vpop.f32.mrf.mxu0
  %v1155 = vadd.f32 0.0, %v1154
  %v1156 = vpop.f32.mrf.mxu0
  %v1157 = vadd.f32 0.0, %v1156
  %v1158 = vpop.f32.mrf.mxu0
  %v1159 = vpop.f32.mrf.mxu0
  %1160 = vdwg.mxu0
  %1161 = vmatprep.subr.bf16.mxu0 0
  %1162 = vmatpush1.bf16.msra.mxu0 %v575
  %1163 = vmatprep.subr.bf16.mxu0 0
  %1164 = vmatpush1.bf16.msra.mxu0 %v572
  %1165 = vmatprep.subr.bf16.mxu0 0
  %1166 = vmatpush1.bf16.msra.mxu0 %v569
  %1167 = vmatprep.subr.bf16.mxu0 0
  %1168 = vmatpush1.bf16.msra.mxu0 %v566
  %1169 = vmatprep.subr.bf16.mxu0 0
  %1170 = vmatpush1.bf16.msra.mxu0 %v563
  %1171 = vmatprep.subr.bf16.mxu0 0
  %1172 = vmatpush1.bf16.msra.mxu0 %v560
  %1173 = vmatprep.subr.bf16.mxu0 0
  %1174 = vmatpush1.bf16.msra.mxu0 %v557
  %1175 = vmatprep.subr.bf16.mxu0 0
  %1176 = vmatpush1.bf16.msra.mxu0 %v554
  %1177 = vmatprep.subr.bf16.mxu0 0
  %1178 = vmatpush2.bf16.msra.mxu0 0
  %1179 = vmatprep.subr.bf16.mxu0 0
  %1180 = vmatpush2.bf16.msra.mxu0 0
  %1181 = vmatprep.subr.bf16.mxu0 0
  %1182 = vmatpush2.bf16.msra.mxu0 0
  %1183 = vmatprep.subr.bf16.mxu0 0
  %1184 = vmatpush2.bf16.msra.mxu0 0
  %1185 = vmatprep.subr.bf16.mxu0 0
  %1186 = vmatpush2.bf16.msra.mxu0 0
  %1187 = vmatprep.subr.bf16.mxu0 0
  %1188 = vmatpush2.bf16.msra.mxu0 0
  %1189 = vmatprep.subr.bf16.mxu0 0
  %1190 = vmatpush2.bf16.msra.mxu0 0
  %1191 = vmatprep.subr.bf16.mxu0 0
  %1192 = vmatpush2.bf16.msra.mxu0 0
  %1193 = vmatprep.mubr.bf16.mxu0 0
  %1194 = vmatmul.mubr.bf16.gmra.mxu0 %v1119
  %v1195 = vpop.f32.mrf.mxu0
  %v1196 = vadd.f32 0.0, %v1195
  %v1197 = vpop.f32.mrf.mxu0
  %v1198 = vpop.f32.mrf.mxu0
  %v1199 = vpop.f32.mrf.mxu0
  %1200 = vdwg.mxu0
  %v1201 = vadd.f32 %v270, %v1155
  %v1202 = vxor.u32 %v1201, 2147483648
  %v1203 = vmul.f32 %v1202, 1.442695
  %v1204 = vpow.pop %v1203
  %v1205 = vadd.f32 %v1204, 1.0
  %v1206 = vrcp.pop %v1205
  %v1207 = vmul.f32 1.0, %v1206
  %v1208 = vadd.f32 %v272, %v1157
  %v1209 = vxor.u32 %v1208, 2147483648
  %v1210 = vmul.f32 %v1209, 1.442695
  %v1211 = vpow.pop %v1210
  %v1212 = vadd.f32 %v1211, 1.0
  %v1213 = vrcp.pop %v1212
  %v1214 = vmul.f32 1.0, %v1213
  %v1215 = vadd.f32 %v1196, %v452
  %v1216 = vmul.f32 %v1207, %v1215
  %v1217 = vadd.f32 %v377, %v1216
  %v1218 = vtanh.pop %v1217
  %v1219 = vsub.f32 1.0, %v1214
  %v1220 = vmul.f32 %v1219, %v1218
  %v1221 = vmul.f32 %v1214, %v1118
  %v1222 = vadd.f32 %v1220, %v1221
  %v1223 = vpack.c.bf16 %v1222, %v1222
  %1224 = vmatprep.subr.bf16.mxu0 %v574
  %1225 = vmatpush1.bf16.msra.mxu0 %v573
  %1226 = vmatprep.subr.bf16.mxu0 %v571
  %1227 = vmatpush1.bf16.msra.mxu0 %v570
  %1228 = vmatprep.subr.bf16.mxu0 %v568
  %1229 = vmatpush1.bf16.msra.mxu0 %v567
  %1230 = vmatprep.subr.bf16.mxu0 %v565
  %1231 = vmatpush1.bf16.msra.mxu0 %v564
  %1232 = vmatprep.subr.bf16.mxu0 %v562
  %1233 = vmatpush1.bf16.msra.mxu0 %v561
  %1234 = vmatprep.subr.bf16.mxu0 %v559
  %1235 = vmatpush1.bf16.msra.mxu0 %v558
  %1236 = vmatprep.subr.bf16.mxu0 %v556
  %1237 = vmatpush1.bf16.msra.mxu0 %v555
  %1238 = vmatprep.subr.bf16.mxu0 %v553
  %1239 = vmatpush1.bf16.msra.mxu0 %v552
  %1240 = vmatprep.subr.bf16.mxu0 0
  %1241 = vmatpush2.bf16.msra.mxu0 0
  %1242 = vmatprep.subr.bf16.mxu0 0
  %1243 = vmatpush2.bf16.msra.mxu0 0
  %1244 = vmatprep.subr.bf16.mxu0 0
  %1245 = vmatpush2.bf16.msra.mxu0 0
  %1246 = vmatprep.subr.bf16.mxu0 0
  %1247 = vmatpush2.bf16.msra.mxu0 0
  %1248 = vmatprep.subr.bf16.mxu0 0
  %1249 = vmatpush2.bf16.msra.mxu0 0
  %1250 = vmatprep.subr.bf16.mxu0 0
  %1251 = vmatpush2.bf16.msra.mxu0 0
  %1252 = vmatprep.subr.bf16.mxu0 0
  %1253 = vmatpush2.bf16.msra.mxu0 0
  %1254 = vmatprep.subr.bf16.mxu0 0
  %1255 = vmatpush2.bf16.msra.mxu0 0
  %1256 = vmatprep.mubr.bf16.mxu0 0
  %1257 = vmatmul.mubr.bf16.gmra.mxu0 %v1223
  %v1258 = vpop.f32.mrf.mxu0
  %v1259 = vadd.f32 0.0, %v1258
  %v1260 = vpop.f32.mrf.mxu0
  %v1261 = vadd.f32 0.0, %v1260
  %v1262 = vpop.f32.mrf.mxu0
  %v1263 = vpop.f32.mrf.mxu0
  %1264 = vdwg.mxu0
  %1265 = vmatprep.subr.bf16.mxu0 0
  %1266 = vmatpush1.bf16.msra.mxu0 %v575
  %1267 = vmatprep.subr.bf16.mxu0 0
  %1268 = vmatpush1.bf16.msra.mxu0 %v572
  %1269 = vmatprep.subr.bf16.mxu0 0
  %1270 = vmatpush1.bf16.msra.mxu0 %v569
  %1271 = vmatprep.subr.bf16.mxu0 0
  %1272 = vmatpush1.bf16.msra.mxu0 %v566
  %1273 = vmatprep.subr.bf16.mxu0 0
  %1274 = vmatpush1.bf16.msra.mxu0 %v563
  %1275 = vmatprep.subr.bf16.mxu0 0
  %1276 = vmatpush1.bf16.msra.mxu0 %v560
  %1277 = vmatprep.subr.bf16.mxu0 0
  %1278 = vmatpush1.bf16.msra.mxu0 %v557
  %1279 = vmatprep.subr.bf16.mxu0 0
  %1280 = vmatpush1.bf16.msra.mxu0 %v554
  %1281 = vmatprep.subr.bf16.mxu0 0
  %1282 = vmatpush2.bf16.msra.mxu0 0
  %1283 = vmatprep.subr.bf16.mxu0 0
  %1284 = vmatpush2.bf16.msra.mxu0 0
  %1285 = vmatprep.subr.bf16.mxu0 0
  %1286 = vmatpush2.bf16.msra.mxu0 0
  %1287 = vmatprep.subr.bf16.mxu0 0
  %1288 = vmatpush2.bf16.msra.mxu0 0
  %1289 = vmatprep.subr.bf16.mxu0 0
  %1290 = vmatpush2.bf16.msra.mxu0 0
  %1291 = vmatprep.subr.bf16.mxu0 0
  %1292 = vmatpush2.bf16.msra.mxu0 0
  %1293 = vmatprep.subr.bf16.mxu0 0
  %1294 = vmatpush2.bf16.msra.mxu0 0
  %1295 = vmatprep.subr.bf16.mxu0 0
  %1296 = vmatpush2.bf16.msra.mxu0 0
  %1297 = vmatprep.mubr.bf16.mxu0 0
  %1298 = vmatmul.mubr.bf16.gmra.mxu0 %v1223
  %v1299 = vpop.f32.mrf.mxu0
  %v1300 = vadd.f32 0.0, %v1299
  %v1301 = vpop.f32.mrf.mxu0
  %v1302 = vpop.f32.mrf.mxu0
  %v1303 = vpop.f32.mrf.mxu0
  %1304 = vdwg.mxu0
  %v1305 = vadd.f32 %v274, %v1259
  %v1306 = vxor.u32 %v1305, 2147483648
  %v1307 = vmul.f32 %v1306, 1.442695
  %v1308 = vpow.pop %v1307
  %v1309 = vadd.f32 %v1308, 1.0
  %v1310 = vrcp.pop %v1309
  %v1311 = vmul.f32 1.0, %v1310
  %v1312 = vadd.f32 %v276, %v1261
  %v1313 = vxor.u32 %v1312, 2147483648
  %v1314 = vmul.f32 %v1313, 1.442695
  %v1315 = vpow.pop %v1314
  %v1316 = vadd.f32 %v1315, 1.0
  %v1317 = vrcp.pop %v1316
  %v1318 = vmul.f32 1.0, %v1317
  %v1319 = vadd.f32 %v1300, %v452
  %v1320 = vmul.f32 %v1311, %v1319
  %v1321 = vadd.f32 %v380, %v1320
  %v1322 = vtanh.pop %v1321
  %v1323 = vsub.f32 1.0, %v1318
  %v1324 = vmul.f32 %v1323, %v1322
  %v1325 = vmul.f32 %v1318, %v1222
  %v1326 = vadd.f32 %v1324, %v1325
  %v1327 = vpack.c.bf16 %v1326, %v1326
  %1328 = vmatprep.subr.bf16.mxu0 %v574
  %1329 = vmatpush1.bf16.msra.mxu0 %v573
  %1330 = vmatprep.subr.bf16.mxu0 %v571
  %1331 = vmatpush1.bf16.msra.mxu0 %v570
  %1332 = vmatprep.subr.bf16.mxu0 %v568
  %1333 = vmatpush1.bf16.msra.mxu0 %v567
  %1334 = vmatprep.subr.bf16.mxu0 %v565
  %1335 = vmatpush1.bf16.msra.mxu0 %v564
  %1336 = vmatprep.subr.bf16.mxu0 %v562
  %1337 = vmatpush1.bf16.msra.mxu0 %v561
  %1338 = vmatprep.subr.bf16.mxu0 %v559
  %1339 = vmatpush1.bf16.msra.mxu0 %v558
  %1340 = vmatprep.subr.bf16.mxu0 %v556
  %1341 = vmatpush1.bf16.msra.mxu0 %v555
  %1342 = vmatprep.subr.bf16.mxu0 %v553
  %1343 = vmatpush1.bf16.msra.mxu0 %v552
  %1344 = vmatprep.subr.bf16.mxu0 0
  %1345 = vmatpush2.bf16.msra.mxu0 0
  %1346 = vmatprep.subr.bf16.mxu0 0
  %1347 = vmatpush2.bf16.msra.mxu0 0
  %1348 = vmatprep.subr.bf16.mxu0 0
  %1349 = vmatpush2.bf16.msra.mxu0 0
  %1350 = vmatprep.subr.bf16.mxu0 0
  %1351 = vmatpush2.bf16.msra.mxu0 0
  %1352 = vmatprep.subr.bf16.mxu0 0
  %1353 = vmatpush2.bf16.msra.mxu0 0
  %1354 = vmatprep.subr.bf16.mxu0 0
  %1355 = vmatpush2.bf16.msra.mxu0 0
  %1356 = vmatprep.subr.bf16.mxu0 0
  %1357 = vmatpush2.bf16.msra.mxu0 0
  %1358 = vmatprep.subr.bf16.mxu0 0
  %1359 = vmatpush2.bf16.msra.mxu0 0
  %1360 = vmatprep.mubr.bf16.mxu0 0
  %1361 = vmatmul.mubr.bf16.gmra.mxu0 %v1327
  %v1362 = vpop.f32.mrf.mxu0
  %v1363 = vadd.f32 0.0, %v1362
  %v1364 = vpop.f32.mrf.mxu0
  %v1365 = vadd.f32 0.0, %v1364
  %v1366 = vpop.f32.mrf.mxu0
  %v1367 = vpop.f32.mrf.mxu0
  %1368 = vdwg.mxu0
  %1369 = vmatprep.subr.bf16.mxu0 0
  %1370 = vmatpush1.bf16.msra.mxu0 %v575
  %1371 = vmatprep.subr.bf16.mxu0 0
  %1372 = vmatpush1.bf16.msra.mxu0 %v572
  %1373 = vmatprep.subr.bf16.mxu0 0
  %1374 = vmatpush1.bf16.msra.mxu0 %v569
  %1375 = vmatprep.subr.bf16.mxu0 0
  %1376 = vmatpush1.bf16.msra.mxu0 %v566
  %1377 = vmatprep.subr.bf16.mxu0 0
  %1378 = vmatpush1.bf16.msra.mxu0 %v563
  %1379 = vmatprep.subr.bf16.mxu0 0
  %1380 = vmatpush1.bf16.msra.mxu0 %v560
  %1381 = vmatprep.subr.bf16.mxu0 0
  %1382 = vmatpush1.bf16.msra.mxu0 %v557
  %1383 = vmatprep.subr.bf16.mxu0 0
  %1384 = vmatpush1.bf16.msra.mxu0 %v554
  %1385 = vmatprep.subr.bf16.mxu0 0
  %1386 = vmatpush2.bf16.msra.mxu0 0
  %1387 = vmatprep.subr.bf16.mxu0 0
  %1388 = vmatpush2.bf16.msra.mxu0 0
  %1389 = vmatprep.subr.bf16.mxu0 0
  %1390 = vmatpush2.bf16.msra.mxu0 0
  %1391 = vmatprep.subr.bf16.mxu0 0
  %1392 = vmatpush2.bf16.msra.mxu0 0
  %1393 = vmatprep.subr.bf16.mxu0 0
  %1394 = vmatpush2.bf16.msra.mxu0 0
  %1395 = vmatprep.subr.bf16.mxu0 0
  %1396 = vmatpush2.bf16.msra.mxu0 0
  %1397 = vmatprep.subr.bf16.mxu0 0
  %1398 = vmatpush2.bf16.msra.mxu0 0
  %1399 = vmatprep.subr.bf16.mxu0 0
  %1400 = vmatpush2.bf16.msra.mxu0 0
  %1401 = vmatprep.mubr.bf16.mxu0 0
  %1402 = vmatmul.mubr.bf16.gmra.mxu0 %v1327
  %v1403 = vpop.f32.mrf.mxu0
  %v1404 = vadd.f32 0.0, %v1403
  %v1405 = vpop.f32.mrf.mxu0
  %v1406 = vpop.f32.mrf.mxu0
  %v1407 = vpop.f32.mrf.mxu0
  %1408 = vdwg.mxu0
  %v1409 = vadd.f32 %v280, %v1363
  %v1410 = vxor.u32 %v1409, 2147483648
  %v1411 = vmul.f32 %v1410, 1.442695
  %v1412 = vpow.pop %v1411
  %v1413 = vadd.f32 %v1412, 1.0
  %v1414 = vrcp.pop %v1413
  %v1415 = vmul.f32 1.0, %v1414
  %v1416 = vadd.f32 %v282, %v1365
  %v1417 = vxor.u32 %v1416, 2147483648
  %v1418 = vmul.f32 %v1417, 1.442695
  %v1419 = vpow.pop %v1418
  %v1420 = vadd.f32 %v1419, 1.0
  %v1421 = vrcp.pop %v1420
  %v1422 = vmul.f32 1.0, %v1421
  %v1423 = vadd.f32 %v1404, %v452
  %v1424 = vmul.f32 %v1415, %v1423
  %v1425 = vadd.f32 %v385, %v1424
  %v1426 = vtanh.pop %v1425
  %v1427 = vsub.f32 1.0, %v1422
  %v1428 = vmul.f32 %v1427, %v1426
  %v1429 = vmul.f32 %v1422, %v1326
  %v1430 = vadd.f32 %v1428, %v1429
  %v1431 = vpack.c.bf16 %v1430, %v1430
  %1432 = vmatprep.subr.bf16.mxu0 %v574
  %1433 = vmatpush1.bf16.msra.mxu0 %v573
  %1434 = vmatprep.subr.bf16.mxu0 %v571
  %1435 = vmatpush1.bf16.msra.mxu0 %v570
  %1436 = vmatprep.subr.bf16.mxu0 %v568
  %1437 = vmatpush1.bf16.msra.mxu0 %v567
  %1438 = vmatprep.subr.bf16.mxu0 %v565
  %1439 = vmatpush1.bf16.msra.mxu0 %v564
  %1440 = vmatprep.subr.bf16.mxu0 %v562
  %1441 = vmatpush1.bf16.msra.mxu0 %v561
  %1442 = vmatprep.subr.bf16.mxu0 %v559
  %1443 = vmatpush1.bf16.msra.mxu0 %v558
  %1444 = vmatprep.subr.bf16.mxu0 %v556
  %1445 = vmatpush1.bf16.msra.mxu0 %v555
  %1446 = vmatprep.subr.bf16.mxu0 %v553
  %1447 = vmatpush1.bf16.msra.mxu0 %v552
  %1448 = vmatprep.subr.bf16.mxu0 0
  %1449 = vmatpush2.bf16.msra.mxu0 0
  %1450 = vmatprep.subr.bf16.mxu0 0
  %1451 = vmatpush2.bf16.msra.mxu0 0
  %1452 = vmatprep.subr.bf16.mxu0 0
  %1453 = vmatpush2.bf16.msra.mxu0 0
  %1454 = vmatprep.subr.bf16.mxu0 0
  %1455 = vmatpush2.bf16.msra.mxu0 0
  %1456 = vmatprep.subr.bf16.mxu0 0
  %1457 = vmatpush2.bf16.msra.mxu0 0
  %1458 = vmatprep.subr.bf16.mxu0 0
  %1459 = vmatpush2.bf16.msra.mxu0 0
  %1460 = vmatprep.subr.bf16.mxu0 0
  %1461 = vmatpush2.bf16.msra.mxu0 0
  %1462 = vmatprep.subr.bf16.mxu0 0
  %1463 = vmatpush2.bf16.msra.mxu0 0
  %1464 = vmatprep.mubr.bf16.mxu0 0
  %1465 = vmatmul.mubr.bf16.gmra.mxu0 %v1431
  %v1466 = vpop.f32.mrf.mxu0
  %v1467 = vadd.f32 0.0, %v1466
  %v1468 = vpop.f32.mrf.mxu0
  %v1469 = vadd.f32 0.0, %v1468
  %v1470 = vpop.f32.mrf.mxu0
  %v1471 = vpop.f32.mrf.mxu0
  %1472 = vdwg.mxu0
  %1473 = vmatprep.subr.bf16.mxu0 0
  %1474 = vmatpush1.bf16.msra.mxu0 %v575
  %1475 = vmatprep.subr.bf16.mxu0 0
  %1476 = vmatpush1.bf16.msra.mxu0 %v572
  %1477 = vmatprep.subr.bf16.mxu0 0
  %1478 = vmatpush1.bf16.msra.mxu0 %v569
  %1479 = vmatprep.subr.bf16.mxu0 0
  %1480 = vmatpush1.bf16.msra.mxu0 %v566
  %1481 = vmatprep.subr.bf16.mxu0 0
  %1482 = vmatpush1.bf16.msra.mxu0 %v563
  %1483 = vmatprep.subr.bf16.mxu0 0
  %1484 = vmatpush1.bf16.msra.mxu0 %v560
  %1485 = vmatprep.subr.bf16.mxu0 0
  %1486 = vmatpush1.bf16.msra.mxu0 %v557
  %1487 = vmatprep.subr.bf16.mxu0 0
  %1488 = vmatpush1.bf16.msra.mxu0 %v554
  %1489 = vmatprep.subr.bf16.mxu0 0
  %1490 = vmatpush2.bf16.msra.mxu0 0
  %1491 = vmatprep.subr.bf16.mxu0 0
  %1492 = vmatpush2.bf16.msra.mxu0 0
  %1493 = vmatprep.subr.bf16.mxu0 0
  %1494 = vmatpush2.bf16.msra.mxu0 0
  %1495 = vmatprep.subr.bf16.mxu0 0
  %1496 = vmatpush2.bf16.msra.mxu0 0
  %1497 = vmatprep.subr.bf16.mxu0 0
  %1498 = vmatpush2.bf16.msra.mxu0 0
  %1499 = vmatprep.subr.bf16.mxu0 0
  %1500 = vmatpush2.bf16.msra.mxu0 0
  %1501 = vmatprep.subr.bf16.mxu0 0
  %1502 = vmatpush2.bf16.msra.mxu0 0
  %1503 = vmatprep.subr.bf16.mxu0 0
  %1504 = vmatpush2.bf16.msra.mxu0 0
  %1505 = vmatprep.mubr.bf16.mxu0 0
  %1506 = vmatmul.mubr.bf16.gmra.mxu0 %v1431
  %v1507 = vpop.f32.mrf.mxu0
  %v1508 = vadd.f32 0.0, %v1507
  %v1509 = vpop.f32.mrf.mxu0
  %v1510 = vpop.f32.mrf.mxu0
  %v1511 = vpop.f32.mrf.mxu0
  %1512 = vdwg.mxu0
  %v1513 = vadd.f32 %v284, %v1467
  %v1514 = vxor.u32 %v1513, 2147483648
  %v1515 = vmul.f32 %v1514, 1.442695
  %v1516 = vpow.pop %v1515
  %v1517 = vadd.f32 %v1516, 1.0
  %v1518 = vrcp.pop %v1517
  %v1519 = vmul.f32 1.0, %v1518
  %v1520 = vadd.f32 %v286, %v1469
  %v1521 = vxor.u32 %v1520, 2147483648
  %v1522 = vmul.f32 %v1521, 1.442695
  %v1523 = vpow.pop %v1522
  %v1524 = vadd.f32 %v1523, 1.0
  %v1525 = vrcp.pop %v1524
  %v1526 = vmul.f32 1.0, %v1525
  %v1527 = vadd.f32 %v1508, %v452
  %v1528 = vmul.f32 %v1519, %v1527
  %v1529 = vadd.f32 %v388, %v1528
  %v1530 = vtanh.pop %v1529
  %v1531 = vsub.f32 1.0, %v1526
  %v1532 = vmul.f32 %v1531, %v1530
  %v1533 = vmul.f32 %v1526, %v1430
  %v1534 = vadd.f32 %v1532, %v1533
  %v1535 = vpack.c.bf16 %v1534, %v1534
  %1536 = vmatprep.subr.bf16.mxu0 %v574
  %1537 = vmatpush1.bf16.msra.mxu0 %v573
  %1538 = vmatprep.subr.bf16.mxu0 %v571
  %1539 = vmatpush1.bf16.msra.mxu0 %v570
  %1540 = vmatprep.subr.bf16.mxu0 %v568
  %1541 = vmatpush1.bf16.msra.mxu0 %v567
  %1542 = vmatprep.subr.bf16.mxu0 %v565
  %1543 = vmatpush1.bf16.msra.mxu0 %v564
  %1544 = vmatprep.subr.bf16.mxu0 %v562
  %1545 = vmatpush1.bf16.msra.mxu0 %v561
  %1546 = vmatprep.subr.bf16.mxu0 %v559
  %1547 = vmatpush1.bf16.msra.mxu0 %v558
  %1548 = vmatprep.subr.bf16.mxu0 %v556
  %1549 = vmatpush1.bf16.msra.mxu0 %v555
  %1550 = vmatprep.subr.bf16.mxu0 %v553
  %1551 = vmatpush1.bf16.msra.mxu0 %v552
  %1552 = vmatprep.subr.bf16.mxu0 0
  %1553 = vmatpush2.bf16.msra.mxu0 0
  %1554 = vmatprep.subr.bf16.mxu0 0
  %1555 = vmatpush2.bf16.msra.mxu0 0
  %1556 = vmatprep.subr.bf16.mxu0 0
  %1557 = vmatpush2.bf16.msra.mxu0 0
  %1558 = vmatprep.subr.bf16.mxu0 0
  %1559 = vmatpush2.bf16.msra.mxu0 0
  %1560 = vmatprep.subr.bf16.mxu0 0
  %1561 = vmatpush2.bf16.msra.mxu0 0
  %1562 = vmatprep.subr.bf16.mxu0 0
  %1563 = vmatpush2.bf16.msra.mxu0 0
  %1564 = vmatprep.subr.bf16.mxu0 0
  %1565 = vmatpush2.bf16.msra.mxu0 0
  %1566 = vmatprep.subr.bf16.mxu0 0
  %1567 = vmatpush2.bf16.msra.mxu0 0
  %1568 = vmatprep.mubr.bf16.mxu0 0
  %1569 = vmatmul.mubr.bf16.gmra.mxu0 %v1535
  %v1570 = vpop.f32.mrf.mxu0
  %v1571 = vadd.f32 0.0, %v1570
  %v1572 = vpop.f32.mrf.mxu0
  %v1573 = vadd.f32 0.0, %v1572
  %v1574 = vpop.f32.mrf.mxu0
  %v1575 = vpop.f32.mrf.mxu0
  %1576 = vdwg.mxu0
  %1577 = vmatprep.subr.bf16.mxu0 0
  %1578 = vmatpush1.bf16.msra.mxu0 %v575
  %1579 = vmatprep.subr.bf16.mxu0 0
  %1580 = vmatpush1.bf16.msra.mxu0 %v572
  %1581 = vmatprep.subr.bf16.mxu0 0
  %1582 = vmatpush1.bf16.msra.mxu0 %v569
  %1583 = vmatprep.subr.bf16.mxu0 0
  %1584 = vmatpush1.bf16.msra.mxu0 %v566
  %1585 = vmatprep.subr.bf16.mxu0 0
  %1586 = vmatpush1.bf16.msra.mxu0 %v563
  %1587 = vmatprep.subr.bf16.mxu0 0
  %1588 = vmatpush1.bf16.msra.mxu0 %v560
  %1589 = vmatprep.subr.bf16.mxu0 0
  %1590 = vmatpush1.bf16.msra.mxu0 %v557
  %1591 = vmatprep.subr.bf16.mxu0 0
  %1592 = vmatpush1.bf16.msra.mxu0 %v554
  %1593 = vmatprep.subr.bf16.mxu0 0
  %1594 = vmatpush2.bf16.msra.mxu0 0
  %1595 = vmatprep.subr.bf16.mxu0 0
  %1596 = vmatpush2.bf16.msra.mxu0 0
  %1597 = vmatprep.subr.bf16.mxu0 0
  %1598 = vmatpush2.bf16.msra.mxu0 0
  %1599 = vmatprep.subr.bf16.mxu0 0
  %1600 = vmatpush2.bf16.msra.mxu0 0
  %1601 = vmatprep.subr.bf16.mxu0 0
  %1602 = vmatpush2.bf16.msra.mxu0 0
  %1603 = vmatprep.subr.bf16.mxu0 0
  %1604 = vmatpush2.bf16.msra.mxu0 0
  %1605 = vmatprep.subr.bf16.mxu0 0
  %1606 = vmatpush2.bf16.msra.mxu0 0
  %1607 = vmatprep.subr.bf16.mxu0 0
  %1608 = vmatpush2.bf16.msra.mxu0 0
  %1609 = vmatprep.mubr.bf16.mxu0 0
  %1610 = vmatmul.mubr.bf16.gmra.mxu0 %v1535
  %v1611 = vpop.f32.mrf.mxu0
  %v1612 = vadd.f32 0.0, %v1611
  %v1613 = vpop.f32.mrf.mxu0
  %v1614 = vpop.f32.mrf.mxu0
  %v1615 = vpop.f32.mrf.mxu0
  %1616 = vdwg.mxu0
  %v1617 = vadd.f32 %v290, %v1571
  %v1618 = vxor.u32 %v1617, 2147483648
  %v1619 = vmul.f32 %v1618, 1.442695
  %v1620 = vpow.pop %v1619
  %v1621 = vadd.f32 %v1620, 1.0
  %v1622 = vrcp.pop %v1621
  %v1623 = vmul.f32 1.0, %v1622
  %v1624 = vadd.f32 %v292, %v1573
  %v1625 = vxor.u32 %v1624, 2147483648
  %v1626 = vmul.f32 %v1625, 1.442695
  %v1627 = vpow.pop %v1626
  %v1628 = vadd.f32 %v1627, 1.0
  %v1629 = vrcp.pop %v1628
  %v1630 = vmul.f32 1.0, %v1629
  %v1631 = vadd.f32 %v1612, %v452
  %v1632 = vmul.f32 %v1623, %v1631
  %v1633 = vadd.f32 %v393, %v1632
  %v1634 = vtanh.pop %v1633
  %v1635 = vsub.f32 1.0, %v1630
  %v1636 = vmul.f32 %v1635, %v1634
  %v1637 = vmul.f32 %v1630, %v1534
  %v1638 = vadd.f32 %v1636, %v1637
  %v1639 = vpack.c.bf16 %v1638, %v1638
  %1640 = vmatprep.subr.bf16.mxu0 %v574
  %1641 = vmatpush1.bf16.msra.mxu0 %v573
  %1642 = vmatprep.subr.bf16.mxu0 %v571
  %1643 = vmatpush1.bf16.msra.mxu0 %v570
  %1644 = vmatprep.subr.bf16.mxu0 %v568
  %1645 = vmatpush1.bf16.msra.mxu0 %v567
  %1646 = vmatprep.subr.bf16.mxu0 %v565
  %1647 = vmatpush1.bf16.msra.mxu0 %v564
  %1648 = vmatprep.subr.bf16.mxu0 %v562
  %1649 = vmatpush1.bf16.msra.mxu0 %v561
  %1650 = vmatprep.subr.bf16.mxu0 %v559
  %1651 = vmatpush1.bf16.msra.mxu0 %v558
  %1652 = vmatprep.subr.bf16.mxu0 %v556
  %1653 = vmatpush1.bf16.msra.mxu0 %v555
  %1654 = vmatprep.subr.bf16.mxu0 %v553
  %1655 = vmatpush1.bf16.msra.mxu0 %v552
  %1656 = vmatprep.subr.bf16.mxu0 0
  %1657 = vmatpush2.bf16.msra.mxu0 0
  %1658 = vmatprep.subr.bf16.mxu0 0
  %1659 = vmatpush2.bf16.msra.mxu0 0
  %1660 = vmatprep.subr.bf16.mxu0 0
  %1661 = vmatpush2.bf16.msra.mxu0 0
  %1662 = vmatprep.subr.bf16.mxu0 0
  %1663 = vmatpush2.bf16.msra.mxu0 0
  %1664 = vmatprep.subr.bf16.mxu0 0
  %1665 = vmatpush2.bf16.msra.mxu0 0
  %1666 = vmatprep.subr.bf16.mxu0 0
  %1667 = vmatpush2.bf16.msra.mxu0 0
  %1668 = vmatprep.subr.bf16.mxu0 0
  %1669 = vmatpush2.bf16.msra.mxu0 0
  %1670 = vmatprep.subr.bf16.mxu0 0
  %1671 = vmatpush2.bf16.msra.mxu0 0
  %1672 = vmatprep.mubr.bf16.mxu0 0
  %1673 = vmatmul.mubr.bf16.gmra.mxu0 %v1639
  %v1674 = vpop.f32.mrf.mxu0
  %v1675 = vadd.f32 0.0, %v1674
  %v1676 = vpop.f32.mrf.mxu0
  %v1677 = vadd.f32 0.0, %v1676
  %v1678 = vpop.f32.mrf.mxu0
  %v1679 = vpop.f32.mrf.mxu0
  %1680 = vdwg.mxu0
  %1681 = vmatprep.subr.bf16.mxu0 0
  %1682 = vmatpush1.bf16.msra.mxu0 %v575
  %1683 = vmatprep.subr.bf16.mxu0 0
  %1684 = vmatpush1.bf16.msra.mxu0 %v572
  %1685 = vmatprep.subr.bf16.mxu0 0
  %1686 = vmatpush1.bf16.msra.mxu0 %v569
  %1687 = vmatprep.subr.bf16.mxu0 0
  %1688 = vmatpush1.bf16.msra.mxu0 %v566
  %1689 = vmatprep.subr.bf16.mxu0 0
  %1690 = vmatpush1.bf16.msra.mxu0 %v563
  %1691 = vmatprep.subr.bf16.mxu0 0
  %1692 = vmatpush1.bf16.msra.mxu0 %v560
  %1693 = vmatprep.subr.bf16.mxu0 0
  %1694 = vmatpush1.bf16.msra.mxu0 %v557
  %1695 = vmatprep.subr.bf16.mxu0 0
  %1696 = vmatpush1.bf16.msra.mxu0 %v554
  %1697 = vmatprep.subr.bf16.mxu0 0
  %1698 = vmatpush2.bf16.msra.mxu0 0
  %1699 = vmatprep.subr.bf16.mxu0 0
  %1700 = vmatpush2.bf16.msra.mxu0 0
  %1701 = vmatprep.subr.bf16.mxu0 0
  %1702 = vmatpush2.bf16.msra.mxu0 0
  %1703 = vmatprep.subr.bf16.mxu0 0
  %1704 = vmatpush2.bf16.msra.mxu0 0
  %1705 = vmatprep.subr.bf16.mxu0 0
  %1706 = vmatpush2.bf16.msra.mxu0 0
  %1707 = vmatprep.subr.bf16.mxu0 0
  %1708 = vmatpush2.bf16.msra.mxu0 0
  %1709 = vmatprep.subr.bf16.mxu0 0
  %1710 = vmatpush2.bf16.msra.mxu0 0
  %1711 = vmatprep.subr.bf16.mxu0 0
  %1712 = vmatpush2.bf16.msra.mxu0 0
  %1713 = vmatprep.mubr.bf16.mxu0 0
  %1714 = vmatmul.mubr.bf16.gmra.mxu0 %v1639
  %v1715 = vpop.f32.mrf.mxu0
  %v1716 = vadd.f32 0.0, %v1715
  %v1717 = vpop.f32.mrf.mxu0
  %v1718 = vpop.f32.mrf.mxu0
  %v1719 = vpop.f32.mrf.mxu0
  %1720 = vdwg.mxu0
  %v1721 = vadd.f32 %v294, %v1675
  %v1722 = vxor.u32 %v1721, 2147483648
  %v1723 = vmul.f32 %v1722, 1.442695
  %v1724 = vpow.pop %v1723
  %v1725 = vadd.f32 %v1724, 1.0
  %v1726 = vrcp.pop %v1725
  %v1727 = vmul.f32 1.0, %v1726
  %v1728 = vadd.f32 %v296, %v1677
  %v1729 = vxor.u32 %v1728, 2147483648
  %v1730 = vmul.f32 %v1729, 1.442695
  %v1731 = vpow.pop %v1730
  %v1732 = vadd.f32 %v1731, 1.0
  %v1733 = vrcp.pop %v1732
  %v1734 = vmul.f32 1.0, %v1733
  %v1735 = vadd.f32 %v1716, %v452
  %v1736 = vmul.f32 %v1727, %v1735
  %v1737 = vadd.f32 %v396, %v1736
  %v1738 = vtanh.pop %v1737
  %v1739 = vsub.f32 1.0, %v1734
  %v1740 = vmul.f32 %v1739, %v1738
  %v1741 = vmul.f32 %v1734, %v1638
  %v1742 = vadd.f32 %v1740, %v1741
  %v1743 = vpack.c.bf16 %v1742, %v1742
  %1744 = vmatprep.subr.bf16.mxu0 %v574
  %1745 = vmatpush1.bf16.msra.mxu0 %v573
  %1746 = vmatprep.subr.bf16.mxu0 %v571
  %1747 = vmatpush1.bf16.msra.mxu0 %v570
  %1748 = vmatprep.subr.bf16.mxu0 %v568
  %1749 = vmatpush1.bf16.msra.mxu0 %v567
  %1750 = vmatprep.subr.bf16.mxu0 %v565
  %1751 = vmatpush1.bf16.msra.mxu0 %v564
  %1752 = vmatprep.subr.bf16.mxu0 %v562
  %1753 = vmatpush1.bf16.msra.mxu0 %v561
  %1754 = vmatprep.subr.bf16.mxu0 %v559
  %1755 = vmatpush1.bf16.msra.mxu0 %v558
  %1756 = vmatprep.subr.bf16.mxu0 %v556
  %1757 = vmatpush1.bf16.msra.mxu0 %v555
  %1758 = vmatprep.subr.bf16.mxu0 %v553
  %1759 = vmatpush1.bf16.msra.mxu0 %v552
  %1760 = vmatprep.subr.bf16.mxu0 0
  %1761 = vmatpush2.bf16.msra.mxu0 0
  %1762 = vmatprep.subr.bf16.mxu0 0
  %1763 = vmatpush2.bf16.msra.mxu0 0
  %1764 = vmatprep.subr.bf16.mxu0 0
  %1765 = vmatpush2.bf16.msra.mxu0 0
  %1766 = vmatprep.subr.bf16.mxu0 0
  %1767 = vmatpush2.bf16.msra.mxu0 0
  %1768 = vmatprep.subr.bf16.mxu0 0
  %1769 = vmatpush2.bf16.msra.mxu0 0
  %1770 = vmatprep.subr.bf16.mxu0 0
  %1771 = vmatpush2.bf16.msra.mxu0 0
  %1772 = vmatprep.subr.bf16.mxu0 0
  %1773 = vmatpush2.bf16.msra.mxu0 0
  %1774 = vmatprep.subr.bf16.mxu0 0
  %1775 = vmatpush2.bf16.msra.mxu0 0
  %1776 = vmatprep.mubr.bf16.mxu0 0
  %1777 = vmatmul.mubr.bf16.gmra.mxu0 %v1743
  %v1778 = vpop.f32.mrf.mxu0
  %v1779 = vadd.f32 0.0, %v1778
  %v1780 = vpop.f32.mrf.mxu0
  %v1781 = vadd.f32 0.0, %v1780
  %v1782 = vpop.f32.mrf.mxu0
  %v1783 = vpop.f32.mrf.mxu0
  %1784 = vdwg.mxu0
  %1785 = vmatprep.subr.bf16.mxu0 0
  %1786 = vmatpush1.bf16.msra.mxu0 %v575
  %1787 = vmatprep.subr.bf16.mxu0 0
  %1788 = vmatpush1.bf16.msra.mxu0 %v572
  %1789 = vmatprep.subr.bf16.mxu0 0
  %1790 = vmatpush1.bf16.msra.mxu0 %v569
  %1791 = vmatprep.subr.bf16.mxu0 0
  %1792 = vmatpush1.bf16.msra.mxu0 %v566
  %1793 = vmatprep.subr.bf16.mxu0 0
  %1794 = vmatpush1.bf16.msra.mxu0 %v563
  %1795 = vmatprep.subr.bf16.mxu0 0
  %1796 = vmatpush1.bf16.msra.mxu0 %v560
  %1797 = vmatprep.subr.bf16.mxu0 0
  %1798 = vmatpush1.bf16.msra.mxu0 %v557
  %1799 = vmatprep.subr.bf16.mxu0 0
  %1800 = vmatpush1.bf16.msra.mxu0 %v554
  %1801 = vmatprep.subr.bf16.mxu0 0
  %1802 = vmatpush2.bf16.msra.mxu0 0
  %1803 = vmatprep.subr.bf16.mxu0 0
  %1804 = vmatpush2.bf16.msra.mxu0 0
  %1805 = vmatprep.subr.bf16.mxu0 0
  %1806 = vmatpush2.bf16.msra.mxu0 0
  %1807 = vmatprep.subr.bf16.mxu0 0
  %1808 = vmatpush2.bf16.msra.mxu0 0
  %1809 = vmatprep.subr.bf16.mxu0 0
  %1810 = vmatpush2.bf16.msra.mxu0 0
  %1811 = vmatprep.subr.bf16.mxu0 0
  %1812 = vmatpush2.bf16.msra.mxu0 0
  %1813 = vmatprep.subr.bf16.mxu0 0
  %1814 = vmatpush2.bf16.msra.mxu0 0
  %1815 = vmatprep.subr.bf16.mxu0 0
  %1816 = vmatpush2.bf16.msra.mxu0 0
  %1817 = vmatprep.mubr.bf16.mxu0 0
  %1818 = vmatmul.mubr.bf16.gmra.mxu0 %v1743
  %v1819 = vpop.f32.mrf.mxu0
  %v1820 = vadd.f32 0.0, %v1819
  %v1821 = vpop.f32.mrf.mxu0
  %v1822 = vpop.f32.mrf.mxu0
  %v1823 = vpop.f32.mrf.mxu0
  %1824 = vdwg.mxu0
  %v1825 = vadd.f32 %v300, %v1779
  %v1826 = vxor.u32 %v1825, 2147483648
  %v1827 = vmul.f32 %v1826, 1.442695
  %v1828 = vpow.pop %v1827
  %v1829 = vadd.f32 %v1828, 1.0
  %v1830 = vrcp.pop %v1829
  %v1831 = vmul.f32 1.0, %v1830
  %v1832 = vadd.f32 %v302, %v1781
  %v1833 = vxor.u32 %v1832, 2147483648
  %v1834 = vmul.f32 %v1833, 1.442695
  %v1835 = vpow.pop %v1834
  %v1836 = vadd.f32 %v1835, 1.0
  %v1837 = vrcp.pop %v1836
  %v1838 = vmul.f32 1.0, %v1837
  %v1839 = vadd.f32 %v1820, %v452
  %v1840 = vmul.f32 %v1831, %v1839
  %v1841 = vadd.f32 %v401, %v1840
  %v1842 = vtanh.pop %v1841
  %v1843 = vsub.f32 1.0, %v1838
  %v1844 = vmul.f32 %v1843, %v1842
  %v1845 = vmul.f32 %v1838, %v1742
  %v1846 = vadd.f32 %v1844, %v1845
  %v1847 = vpack.c.bf16 %v1846, %v1846
  %1848 = vmatprep.subr.bf16.mxu0 %v574
  %1849 = vmatpush1.bf16.msra.mxu0 %v573
  %1850 = vmatprep.subr.bf16.mxu0 %v571
  %1851 = vmatpush1.bf16.msra.mxu0 %v570
  %1852 = vmatprep.subr.bf16.mxu0 %v568
  %1853 = vmatpush1.bf16.msra.mxu0 %v567
  %1854 = vmatprep.subr.bf16.mxu0 %v565
  %1855 = vmatpush1.bf16.msra.mxu0 %v564
  %1856 = vmatprep.subr.bf16.mxu0 %v562
  %1857 = vmatpush1.bf16.msra.mxu0 %v561
  %1858 = vmatprep.subr.bf16.mxu0 %v559
  %1859 = vmatpush1.bf16.msra.mxu0 %v558
  %1860 = vmatprep.subr.bf16.mxu0 %v556
  %1861 = vmatpush1.bf16.msra.mxu0 %v555
  %1862 = vmatprep.subr.bf16.mxu0 %v553
  %1863 = vmatpush1.bf16.msra.mxu0 %v552
  %1864 = vmatprep.subr.bf16.mxu0 0
  %1865 = vmatpush2.bf16.msra.mxu0 0
  %1866 = vmatprep.subr.bf16.mxu0 0
  %1867 = vmatpush2.bf16.msra.mxu0 0
  %1868 = vmatprep.subr.bf16.mxu0 0
  %1869 = vmatpush2.bf16.msra.mxu0 0
  %1870 = vmatprep.subr.bf16.mxu0 0
  %1871 = vmatpush2.bf16.msra.mxu0 0
  %1872 = vmatprep.subr.bf16.mxu0 0
  %1873 = vmatpush2.bf16.msra.mxu0 0
  %1874 = vmatprep.subr.bf16.mxu0 0
  %1875 = vmatpush2.bf16.msra.mxu0 0
  %1876 = vmatprep.subr.bf16.mxu0 0
  %1877 = vmatpush2.bf16.msra.mxu0 0
  %1878 = vmatprep.subr.bf16.mxu0 0
  %1879 = vmatpush2.bf16.msra.mxu0 0
  %1880 = vmatprep.mubr.bf16.mxu0 0
  %1881 = vmatmul.mubr.bf16.gmra.mxu0 %v1847
  %v1882 = vpop.f32.mrf.mxu0
  %v1883 = vadd.f32 0.0, %v1882
  %v1884 = vpop.f32.mrf.mxu0
  %v1885 = vadd.f32 0.0, %v1884
  %v1886 = vpop.f32.mrf.mxu0
  %v1887 = vpop.f32.mrf.mxu0
  %1888 = vdwg.mxu0
  %1889 = vmatprep.subr.bf16.mxu0 0
  %1890 = vmatpush1.bf16.msra.mxu0 %v575
  %1891 = vmatprep.subr.bf16.mxu0 0
  %1892 = vmatpush1.bf16.msra.mxu0 %v572
  %1893 = vmatprep.subr.bf16.mxu0 0
  %1894 = vmatpush1.bf16.msra.mxu0 %v569
  %1895 = vmatprep.subr.bf16.mxu0 0
  %1896 = vmatpush1.bf16.msra.mxu0 %v566
  %1897 = vmatprep.subr.bf16.mxu0 0
  %1898 = vmatpush1.bf16.msra.mxu0 %v563
  %1899 = vmatprep.subr.bf16.mxu0 0
  %1900 = vmatpush1.bf16.msra.mxu0 %v560
  %1901 = vmatprep.subr.bf16.mxu0 0
  %1902 = vmatpush1.bf16.msra.mxu0 %v557
  %1903 = vmatprep.subr.bf16.mxu0 0
  %1904 = vmatpush1.bf16.msra.mxu0 %v554
  %1905 = vmatprep.subr.bf16.mxu0 0
  %1906 = vmatpush2.bf16.msra.mxu0 0
  %1907 = vmatprep.subr.bf16.mxu0 0
  %1908 = vmatpush2.bf16.msra.mxu0 0
  %1909 = vmatprep.subr.bf16.mxu0 0
  %1910 = vmatpush2.bf16.msra.mxu0 0
  %1911 = vmatprep.subr.bf16.mxu0 0
  %1912 = vmatpush2.bf16.msra.mxu0 0
  %1913 = vmatprep.subr.bf16.mxu0 0
  %1914 = vmatpush2.bf16.msra.mxu0 0
  %1915 = vmatprep.subr.bf16.mxu0 0
  %1916 = vmatpush2.bf16.msra.mxu0 0
  %1917 = vmatprep.subr.bf16.mxu0 0
  %1918 = vmatpush2.bf16.msra.mxu0 0
  %1919 = vmatprep.subr.bf16.mxu0 0
  %1920 = vmatpush2.bf16.msra.mxu0 0
  %1921 = vmatprep.mubr.bf16.mxu0 0
  %1922 = vmatmul.mubr.bf16.gmra.mxu0 %v1847
  %v1923 = vpop.f32.mrf.mxu0
  %v1924 = vadd.f32 0.0, %v1923
  %v1925 = vpop.f32.mrf.mxu0
  %v1926 = vpop.f32.mrf.mxu0
  %v1927 = vpop.f32.mrf.mxu0
  %1928 = vdwg.mxu0
  %v1929 = vadd.f32 %v304, %v1883
  %v1930 = vxor.u32 %v1929, 2147483648
  %v1931 = vmul.f32 %v1930, 1.442695
  %v1932 = vpow.pop %v1931
  %v1933 = vadd.f32 %v1932, 1.0
  %v1934 = vrcp.pop %v1933
  %v1935 = vmul.f32 1.0, %v1934
  %v1936 = vadd.f32 %v306, %v1885
  %v1937 = vxor.u32 %v1936, 2147483648
  %v1938 = vmul.f32 %v1937, 1.442695
  %v1939 = vpow.pop %v1938
  %v1940 = vadd.f32 %v1939, 1.0
  %v1941 = vrcp.pop %v1940
  %v1942 = vmul.f32 1.0, %v1941
  %v1943 = vadd.f32 %v1924, %v452
  %v1944 = vmul.f32 %v1935, %v1943
  %v1945 = vadd.f32 %v404, %v1944
  %v1946 = vtanh.pop %v1945
  %v1947 = vsub.f32 1.0, %v1942
  %v1948 = vmul.f32 %v1947, %v1946
  %v1949 = vmul.f32 %v1942, %v1846
  %v1950 = vadd.f32 %v1948, %v1949
  %v1951 = vpack.c.bf16 %v1950, %v1950
  %1952 = vmatprep.subr.bf16.mxu0 %v574
  %1953 = vmatpush1.bf16.msra.mxu0 %v573
  %1954 = vmatprep.subr.bf16.mxu0 %v571
  %1955 = vmatpush1.bf16.msra.mxu0 %v570
  %1956 = vmatprep.subr.bf16.mxu0 %v568
  %1957 = vmatpush1.bf16.msra.mxu0 %v567
  %1958 = vmatprep.subr.bf16.mxu0 %v565
  %1959 = vmatpush1.bf16.msra.mxu0 %v564
  %1960 = vmatprep.subr.bf16.mxu0 %v562
  %1961 = vmatpush1.bf16.msra.mxu0 %v561
  %1962 = vmatprep.subr.bf16.mxu0 %v559
  %1963 = vmatpush1.bf16.msra.mxu0 %v558
  %1964 = vmatprep.subr.bf16.mxu0 %v556
  %1965 = vmatpush1.bf16.msra.mxu0 %v555
  %1966 = vmatprep.subr.bf16.mxu0 %v553
  %1967 = vmatpush1.bf16.msra.mxu0 %v552
  %1968 = vmatprep.subr.bf16.mxu0 0
  %1969 = vmatpush2.bf16.msra.mxu0 0
  %1970 = vmatprep.subr.bf16.mxu0 0
  %1971 = vmatpush2.bf16.msra.mxu0 0
  %1972 = vmatprep.subr.bf16.mxu0 0
  %1973 = vmatpush2.bf16.msra.mxu0 0
  %1974 = vmatprep.subr.bf16.mxu0 0
  %1975 = vmatpush2.bf16.msra.mxu0 0
  %1976 = vmatprep.subr.bf16.mxu0 0
  %1977 = vmatpush2.bf16.msra.mxu0 0
  %1978 = vmatprep.subr.bf16.mxu0 0
  %1979 = vmatpush2.bf16.msra.mxu0 0
  %1980 = vmatprep.subr.bf16.mxu0 0
  %1981 = vmatpush2.bf16.msra.mxu0 0
  %1982 = vmatprep.subr.bf16.mxu0 0
  %1983 = vmatpush2.bf16.msra.mxu0 0
  %1984 = vmatprep.mubr.bf16.mxu0 0
  %1985 = vmatmul.mubr.bf16.gmra.mxu0 %v1951
  %v1986 = vpop.f32.mrf.mxu0
  %v1987 = vadd.f32 0.0, %v1986
  %v1988 = vpop.f32.mrf.mxu0
  %v1989 = vadd.f32 0.0, %v1988
  %v1990 = vpop.f32.mrf.mxu0
  %v1991 = vpop.f32.mrf.mxu0
  %1992 = vdwg.mxu0
  %1993 = vmatprep.subr.bf16.mxu0 0
  %1994 = vmatpush1.bf16.msra.mxu0 %v575
  %1995 = vmatprep.subr.bf16.mxu0 0
  %1996 = vmatpush1.bf16.msra.mxu0 %v572
  %1997 = vmatprep.subr.bf16.mxu0 0
  %1998 = vmatpush1.bf16.msra.mxu0 %v569
  %1999 = vmatprep.subr.bf16.mxu0 0
  %2000 = vmatpush1.bf16.msra.mxu0 %v566
  %2001 = vmatprep.subr.bf16.mxu0 0
  %2002 = vmatpush1.bf16.msra.mxu0 %v563
  %2003 = vmatprep.subr.bf16.mxu0 0
  %2004 = vmatpush1.bf16.msra.mxu0 %v560
  %2005 = vmatprep.subr.bf16.mxu0 0
  %2006 = vmatpush1.bf16.msra.mxu0 %v557
  %2007 = vmatprep.subr.bf16.mxu0 0
  %2008 = vmatpush1.bf16.msra.mxu0 %v554
  %2009 = vmatprep.subr.bf16.mxu0 0
  %2010 = vmatpush2.bf16.msra.mxu0 0
  %2011 = vmatprep.subr.bf16.mxu0 0
  %2012 = vmatpush2.bf16.msra.mxu0 0
  %2013 = vmatprep.subr.bf16.mxu0 0
  %2014 = vmatpush2.bf16.msra.mxu0 0
  %2015 = vmatprep.subr.bf16.mxu0 0
  %2016 = vmatpush2.bf16.msra.mxu0 0
  %2017 = vmatprep.subr.bf16.mxu0 0
  %2018 = vmatpush2.bf16.msra.mxu0 0
  %2019 = vmatprep.subr.bf16.mxu0 0
  %2020 = vmatpush2.bf16.msra.mxu0 0
  %2021 = vmatprep.subr.bf16.mxu0 0
  %2022 = vmatpush2.bf16.msra.mxu0 0
  %2023 = vmatprep.subr.bf16.mxu0 0
  %2024 = vmatpush2.bf16.msra.mxu0 0
  %2025 = vmatprep.mubr.bf16.mxu0 0
  %2026 = vmatmul.mubr.bf16.gmra.mxu0 %v1951
  %v2027 = vpop.f32.mrf.mxu0
  %v2028 = vadd.f32 0.0, %v2027
  %v2029 = vpop.f32.mrf.mxu0
  %v2030 = vpop.f32.mrf.mxu0
  %v2031 = vpop.f32.mrf.mxu0
  %2032 = vdwg.mxu0
  %v2033 = vadd.f32 %v310, %v1987
  %v2034 = vxor.u32 %v2033, 2147483648
  %v2035 = vmul.f32 %v2034, 1.442695
  %v2036 = vpow.pop %v2035
  %v2037 = vadd.f32 %v2036, 1.0
  %v2038 = vrcp.pop %v2037
  %v2039 = vmul.f32 1.0, %v2038
  %v2040 = vadd.f32 %v312, %v1989
  %v2041 = vxor.u32 %v2040, 2147483648
  %v2042 = vmul.f32 %v2041, 1.442695
  %v2043 = vpow.pop %v2042
  %v2044 = vadd.f32 %v2043, 1.0
  %v2045 = vrcp.pop %v2044
  %v2046 = vmul.f32 1.0, %v2045
  %v2047 = vadd.f32 %v2028, %v452
  %v2048 = vmul.f32 %v2039, %v2047
  %v2049 = vadd.f32 %v409, %v2048
  %v2050 = vtanh.pop %v2049
  %v2051 = vsub.f32 1.0, %v2046
  %v2052 = vmul.f32 %v2051, %v2050
  %v2053 = vmul.f32 %v2046, %v1950
  %v2054 = vadd.f32 %v2052, %v2053
  %v2055 = vpack.c.bf16 %v2054, %v2054
  %2056 = vmatprep.subr.bf16.mxu0 %v574
  %2057 = vmatpush1.bf16.msra.mxu0 %v573
  %2058 = vmatprep.subr.bf16.mxu0 %v571
  %2059 = vmatpush1.bf16.msra.mxu0 %v570
  %2060 = vmatprep.subr.bf16.mxu0 %v568
  %2061 = vmatpush1.bf16.msra.mxu0 %v567
  %2062 = vmatprep.subr.bf16.mxu0 %v565
  %2063 = vmatpush1.bf16.msra.mxu0 %v564
  %2064 = vmatprep.subr.bf16.mxu0 %v562
  %2065 = vmatpush1.bf16.msra.mxu0 %v561
  %2066 = vmatprep.subr.bf16.mxu0 %v559
  %2067 = vmatpush1.bf16.msra.mxu0 %v558
  %2068 = vmatprep.subr.bf16.mxu0 %v556
  %2069 = vmatpush1.bf16.msra.mxu0 %v555
  %2070 = vmatprep.subr.bf16.mxu0 %v553
  %2071 = vmatpush1.bf16.msra.mxu0 %v552
  %2072 = vmatprep.subr.bf16.mxu0 0
  %2073 = vmatpush2.bf16.msra.mxu0 0
  %2074 = vmatprep.subr.bf16.mxu0 0
  %2075 = vmatpush2.bf16.msra.mxu0 0
  %2076 = vmatprep.subr.bf16.mxu0 0
  %2077 = vmatpush2.bf16.msra.mxu0 0
  %2078 = vmatprep.subr.bf16.mxu0 0
  %2079 = vmatpush2.bf16.msra.mxu0 0
  %2080 = vmatprep.subr.bf16.mxu0 0
  %2081 = vmatpush2.bf16.msra.mxu0 0
  %2082 = vmatprep.subr.bf16.mxu0 0
  %2083 = vmatpush2.bf16.msra.mxu0 0
  %2084 = vmatprep.subr.bf16.mxu0 0
  %2085 = vmatpush2.bf16.msra.mxu0 0
  %2086 = vmatprep.subr.bf16.mxu0 0
  %2087 = vmatpush2.bf16.msra.mxu0 0
  %2088 = vmatprep.mubr.bf16.mxu0 0
  %2089 = vmatmul.mubr.bf16.gmra.mxu0 %v2055
  %v2090 = vpop.f32.mrf.mxu0
  %v2091 = vadd.f32 0.0, %v2090
  %v2092 = vpop.f32.mrf.mxu0
  %v2093 = vadd.f32 0.0, %v2092
  %v2094 = vpop.f32.mrf.mxu0
  %v2095 = vpop.f32.mrf.mxu0
  %2096 = vdwg.mxu0
  %2097 = vmatprep.subr.bf16.mxu0 0
  %2098 = vmatpush1.bf16.msra.mxu0 %v575
  %2099 = vmatprep.subr.bf16.mxu0 0
  %2100 = vmatpush1.bf16.msra.mxu0 %v572
  %2101 = vmatprep.subr.bf16.mxu0 0
  %2102 = vmatpush1.bf16.msra.mxu0 %v569
  %2103 = vmatprep.subr.bf16.mxu0 0
  %2104 = vmatpush1.bf16.msra.mxu0 %v566
  %2105 = vmatprep.subr.bf16.mxu0 0
  %2106 = vmatpush1.bf16.msra.mxu0 %v563
  %2107 = vmatprep.subr.bf16.mxu0 0
  %2108 = vmatpush1.bf16.msra.mxu0 %v560
  %2109 = vmatprep.subr.bf16.mxu0 0
  %2110 = vmatpush1.bf16.msra.mxu0 %v557
  %2111 = vmatprep.subr.bf16.mxu0 0
  %2112 = vmatpush1.bf16.msra.mxu0 %v554
  %2113 = vmatprep.subr.bf16.mxu0 0
  %2114 = vmatpush2.bf16.msra.mxu0 0
  %2115 = vmatprep.subr.bf16.mxu0 0
  %2116 = vmatpush2.bf16.msra.mxu0 0
  %2117 = vmatprep.subr.bf16.mxu0 0
  %2118 = vmatpush2.bf16.msra.mxu0 0
  %2119 = vmatprep.subr.bf16.mxu0 0
  %2120 = vmatpush2.bf16.msra.mxu0 0
  %2121 = vmatprep.subr.bf16.mxu0 0
  %2122 = vmatpush2.bf16.msra.mxu0 0
  %2123 = vmatprep.subr.bf16.mxu0 0
  %2124 = vmatpush2.bf16.msra.mxu0 0
  %2125 = vmatprep.subr.bf16.mxu0 0
  %2126 = vmatpush2.bf16.msra.mxu0 0
  %2127 = vmatprep.subr.bf16.mxu0 0
  %2128 = vmatpush2.bf16.msra.mxu0 0
  %2129 = vmatprep.mubr.bf16.mxu0 0
  %2130 = vmatmul.mubr.bf16.gmra.mxu0 %v2055
  %v2131 = vpop.f32.mrf.mxu0
  %v2132 = vadd.f32 0.0, %v2131
  %v2133 = vpop.f32.mrf.mxu0
  %v2134 = vpop.f32.mrf.mxu0
  %v2135 = vpop.f32.mrf.mxu0
  %2136 = vdwg.mxu0
  %v2137 = vadd.f32 %v314, %v2091
  %v2138 = vxor.u32 %v2137, 2147483648
  %v2139 = vmul.f32 %v2138, 1.442695
  %v2140 = vpow.pop %v2139
  %v2141 = vadd.f32 %v2140, 1.0
  %v2142 = vrcp.pop %v2141
  %v2143 = vmul.f32 1.0, %v2142
  %v2144 = vadd.f32 %v316, %v2093
  %v2145 = vxor.u32 %v2144, 2147483648
  %v2146 = vmul.f32 %v2145, 1.442695
  %v2147 = vpow.pop %v2146
  %v2148 = vadd.f32 %v2147, 1.0
  %v2149 = vrcp.pop %v2148
  %v2150 = vmul.f32 1.0, %v2149
  %v2151 = vadd.f32 %v2132, %v452
  %v2152 = vmul.f32 %v2143, %v2151
  %v2153 = vadd.f32 %v412, %v2152
  %v2154 = vtanh.pop %v2153
  %v2155 = vsub.f32 1.0, %v2150
  %v2156 = vmul.f32 %v2155, %v2154
  %v2157 = vmul.f32 %v2150, %v2054
  %v2158 = vadd.f32 %v2156, %v2157
  %v2159 = vpack.c.bf16 %v2158, %v2158
  %v2160 = vld [vmem:[%s5] sm:$0xf]
  %v2161 = vld [vmem:[%s5 + $0x4] sm:$0xf]
  %v2162 = vld [vmem:[%s5 + $0x8] sm:$0xf]
  %v2163 = vld [vmem:[%s5 + $0xc] sm:$0xf]
  %v2164 = vld [vmem:[%s5 + $0x10] sm:$0xf]
  %v2165 = vld [vmem:[%s5 + $0x14] sm:$0xf]
  %v2166 = vld [vmem:[%s5 + $0x18] sm:$0xf]
  %v2167 = vld [vmem:[%s5 + $0x1c] sm:$0xf]
  %v2168 = vld [vmem:[%s5 + $0x20] sm:$0xf]
  %v2169 = vld [vmem:[%s5 + $0x24] sm:$0xf]
  %v2170 = vld [vmem:[%s5 + $0x28] sm:$0xf]
  %v2171 = vld [vmem:[%s5 + $0x2c] sm:$0xf]
  %v2172 = vld [vmem:[%s5 + $0x30] sm:$0xf]
  %v2173 = vld [vmem:[%s5 + $0x34] sm:$0xf]
  %v2174 = vld [vmem:[%s5 + $0x38] sm:$0xf]
  %v2175 = vld [vmem:[%s5 + $0x3c] sm:$0xf]
  %v2176 = vld [vmem:[%s6] sm:$0x1]
  %v2178 = vlaneseq
  %v2179 = vshrl.u32 %v2178, 7
  %v2180 = vsub.s32 0, %v2179
  %v2181 = vrot.slane %v2176, %v2180
  %v2199 = vunpack.c.l.b16 %v2160
  %v2200 = vunpack.c.l.b16 %v2161
  %v2201 = vunpack.c.l.b16 %v2162
  %v2202 = vunpack.c.l.b16 %v2163
  %v2203 = vunpack.c.l.b16 %v2164
  %v2204 = vunpack.c.l.b16 %v2165
  %v2205 = vunpack.c.l.b16 %v2166
  %v2206 = vunpack.c.l.b16 %v2167
  %v2207 = vunpack.c.l.b16 %v2168
  %v2208 = vunpack.c.l.b16 %v2169
  %v2209 = vunpack.c.l.b16 %v2170
  %v2210 = vunpack.c.l.b16 %v2171
  %v2211 = vunpack.c.l.b16 %v2172
  %v2212 = vunpack.c.l.b16 %v2173
  %v2213 = vunpack.c.l.b16 %v2174
  %v2214 = vunpack.c.l.b16 %v2175
  %v2215 = vpack.c.b16 %v2200, %v2199
  %v2216 = vpack.c.b16 %v2202, %v2201
  %v2217 = vpack.c.b16 %v2204, %v2203
  %v2218 = vpack.c.b16 %v2206, %v2205
  %v2219 = vpack.c.b16 %v2208, %v2207
  %v2220 = vpack.c.b16 %v2210, %v2209
  %v2221 = vpack.c.b16 %v2212, %v2211
  %v2222 = vpack.c.b16 %v2214, %v2213
  %2231 = vmatprep.subr.bf16.mxu0 0
  %2232 = vmatpush1.bf16.msra.mxu0 %v2222
  %2233 = vmatprep.subr.bf16.mxu0 0
  %2234 = vmatpush1.bf16.msra.mxu0 %v2221
  %2235 = vmatprep.subr.bf16.mxu0 0
  %2236 = vmatpush1.bf16.msra.mxu0 %v2220
  %2237 = vmatprep.subr.bf16.mxu0 0
  %2238 = vmatpush1.bf16.msra.mxu0 %v2219
  %2239 = vmatprep.subr.bf16.mxu0 0
  %2240 = vmatpush1.bf16.msra.mxu0 %v2218
  %2241 = vmatprep.subr.bf16.mxu0 0
  %2242 = vmatpush1.bf16.msra.mxu0 %v2217
  %2243 = vmatprep.subr.bf16.mxu0 0
  %2244 = vmatpush1.bf16.msra.mxu0 %v2216
  %2245 = vmatprep.subr.bf16.mxu0 0
  %2246 = vmatpush1.bf16.msra.mxu0 %v2215
  %2247 = vmatprep.subr.bf16.mxu0 0
  %2248 = vmatpush2.bf16.msra.mxu0 0
  %2249 = vmatprep.subr.bf16.mxu0 0
  %2250 = vmatpush2.bf16.msra.mxu0 0
  %2251 = vmatprep.subr.bf16.mxu0 0
  %2252 = vmatpush2.bf16.msra.mxu0 0
  %2253 = vmatprep.subr.bf16.mxu0 0
  %2254 = vmatpush2.bf16.msra.mxu0 0
  %2255 = vmatprep.subr.bf16.mxu0 0
  %2256 = vmatpush2.bf16.msra.mxu0 0
  %2257 = vmatprep.subr.bf16.mxu0 0
  %2258 = vmatpush2.bf16.msra.mxu0 0
  %2259 = vmatprep.subr.bf16.mxu0 0
  %2260 = vmatpush2.bf16.msra.mxu0 0
  %2261 = vmatprep.subr.bf16.mxu0 0
  %2262 = vmatpush2.bf16.msra.mxu0 0
  %2263 = vmatprep.mubr.bf16.mxu0 0
  %2264 = vmatmul.mubr.bf16.gmra.mxu0 %v2159
  %v2265 = vpop.f32.mrf.mxu0
  %v2266 = vadd.f32 %v2181, %v2265
  %v2267 = vpop.f32.mrf.mxu0
  %v2268 = vpop.f32.mrf.mxu0
  %v2269 = vpop.f32.mrf.mxu0
  %2270 = vdwg.mxu0
  %2271 = vst [vmem:[%s7] sm:$0xff] %v2266
  // Predicated region
  $region30: #{gru_fc_forward.1} parent=0 // pred_check
    _
  $region31: #{gru_fc_forward.1} parent=0 // pred_check_branch
    %2273 = sbr.rel (0) target = $region33
  $region32: #{gru_fc_forward.1} parent=0 // pred_region
    _
  $region33: #{gru_fc_forward.1} parent=0 // pred_fallthru
    _
  // Predicated region
  $region34: #{gru_fc_forward.1} parent=0 // pred_check
    _
  $region35: #{gru_fc_forward.1} parent=0 // pred_check_branch
    %2275 = sbr.rel (0) target = $region37
  $region36: #{gru_fc_forward.1} parent=0 // pred_region
    _
  $region37: #{gru_fc_forward.1} parent=0 // pred_fallthru
    _

</llo_original>
